<compile_context>
chip_gen: v7x
topology: tpu7x:2x2x1
jax: 0.10.0
libtpu: 0.0.40
codegen_flags: <defaults>
</compile_context>

<pallas_src>
import functools
import numpy as np
import jax
import jax.numpy as jnp
from jax.experimental import pallas as pl
from jax.experimental.pallas import tpu as pltpu


def _apply_act(name, v):
    if name == "relu":
        return jnp.maximum(v, 0.0)
    if name == "tanh":
        return jnp.tanh(v)
    if name == "sigmoid":
        return jax.nn.sigmoid(v)
    return v


# --------------------------------- kernel ---------------------------------------
def dynamic_fc_kernel(x_ref, w_ref, b_ref, o_ref, *, degree, knots, num_basis,
                      out_pad, act, islastlayer):
    x = x_ref[...]                                   # (TM, 1+ind) f32
    t = x[:, 0:1]                                    # (TM, 1) treatment column

    # ---- truncated-power basis columns (VPU only, no transcendentals) ----
    ones = jnp.ones_like(t)
    basis = [ones]                                   # basis_0(t) = 1
    tp = ones
    for _ in range(degree):
        tp = tp * t
        basis.append(tp)                             # t, t^2, ..., t^degree
    for k in knots:
        r = jnp.maximum(t - k, 0.0)
        rp = r
        for _ in range(degree - 1):
            rp = rp * r
        basis.append(rp)                             # relu(t - k)^degree
    # len(basis) == num_basis

    # ---- one fused MXU matmul: (TM, 1+ind) @ (1+ind, d*out_pad) ----
    z = jnp.dot(x, w_ref[...], preferred_element_type=jnp.float32)

    # ---- basis-weighted reduction over d lane-aligned 128-wide blocks (VPU) ----
    acc = jnp.zeros((x.shape[0], out_pad), dtype=jnp.float32)
    for j in range(num_basis):
        zj = z[:, j * out_pad:(j + 1) * out_pad]     # static, 128-aligned slice
        acc = acc + basis[j] * (zj + b_ref[j:j + 1, :])

    out = _apply_act(act, acc)

    # ---- treatment passthrough in lane 0 for non-last layers ----
    if not islastlayer:
        lane = jax.lax.broadcasted_iota(jnp.int32, out.shape, 1)
        out = jnp.where(lane == 0, t, out)

    o_ref[...] = out                                  # dense (TM, out_pad) store


# --------------------------------- wrapper ---------------------------------------
def dynamic_fc_forward(x, weight, bias, *, degree, knots, act="relu",
                       isbias=1, islastlayer=0, tile_m=256):
    """x: (N, 1+ind) f32; weight: (ind, outd, d); bias: (outd, d) or None."""
    assert degree >= 2, "only degree >= 2 supported (see TODO above)"
    n, f = x.shape
    ind, outd, d = weight.shape
    assert f == ind + 1
    num_basis = degree + 1 + len(knots)
    assert d == num_basis

    col_off = 0 if islastlayer else 1
    out_width = outd + col_off
    out_pad = ((out_width + 127) // 128) * 128        # lane-dense output width

    # ---- host-side weight packing into a single 2-D slab ----
    # W_packed[1+i, j*out_pad + col_off + o] = weight[i, o, j]; row 0 (treat) = 0.
    w_perm = jnp.transpose(weight, (0, 2, 1)).astype(jnp.float32)        # (ind, d, outd)
    w_blocks = jnp.pad(w_perm, ((0, 0), (0, 0), (col_off, out_pad - out_width)))
    w_packed = jnp.concatenate(
        [jnp.zeros((1, num_basis, out_pad), jnp.float32), w_blocks], axis=0
    ).reshape(ind + 1, num_basis * out_pad)

    # bias slab: B[j, col_off + o] = bias[o, j], padded to (8, out_pad)
    d_pad = ((num_basis + 7) // 8) * 8
    if isbias and bias is not None:
        b_rows = jnp.pad(jnp.transpose(bias, (1, 0)).astype(jnp.float32),
                         ((0, d_pad - num_basis), (col_off, out_pad - out_width)))
    else:
        b_rows = jnp.zeros((d_pad, out_pad), jnp.float32)

    # ---- row-tail handling: pad batch to a multiple of tile_m ----
    pad_n = tile_m * pl.cdiv(n, tile_m)
    x_p = jnp.pad(x.astype(jnp.float32), ((0, pad_n - n), (0, 0)))

    kernel = functools.partial(
        dynamic_fc_kernel, degree=degree, knots=tuple(float(k) for k in knots),
        num_basis=num_basis, out_pad=out_pad, act=act, islastlayer=islastlayer)

    out_padded = pl.pallas_call(
        kernel,
        out_shape=jax.ShapeDtypeStruct((pad_n, out_pad), jnp.float32),
        grid=(pad_n // tile_m,),
        in_specs=[
            pl.BlockSpec((tile_m, ind + 1), lambda i: (i, 0)),
            pl.BlockSpec(w_packed.shape, lambda i: (0, 0)),
            pl.BlockSpec(b_rows.shape, lambda i: (0, 0)),
        ],
        out_specs=pl.BlockSpec((tile_m, out_pad), lambda i: (i, 0)),
        compiler_params=pltpu.CompilerParams(dimension_semantics=("parallel",)),
    )(x_p, w_packed, b_rows)

    return out_padded[:n, :out_width]


# --------------------------- pure-JAX reference ----------------------------------
def dynamic_fc_reference(x, weight, bias, *, degree, knots, act="relu",
                         isbias=1, islastlayer=0):
    t = x[:, 0]
    feat = x[:, 1:]
    cols = [jnp.ones_like(t)]
    for p in range(1, degree + 1):
        cols.append(t ** p)
    for k in knots:
        cols.append(jnp.maximum(t - k, 0.0) ** degree)
    basis = jnp.stack(cols, axis=1)                                   # (N, d)
    xfw = jnp.einsum("ni,iod->nod", feat, weight,
                     precision=jax.lax.Precision.HIGHEST)             # (N, outd, d)
    out = jnp.sum(xfw * basis[:, None, :], axis=2)                    # (N, outd)
    if isbias and bias is not None:
        out = out + basis @ bias.T
    out = _apply_act(act, out)
    if not islastlayer:
        out = jnp.concatenate([t[:, None], out], axis=1)
    return out


# --------------------------------- main ------------------------------------------
if __name__ == "__main__":
    key = jax.random.PRNGKey(0)

    IND, OUTD = 63, 127                  # 1 + OUTD = 128 -> naturally lane-dense output
    DEGREE, KNOTS = 2, (1.0 / 3.0, 2.0 / 3.0)
    NUM_BASIS = DEGREE + 1 + len(KNOTS)  # 5 truncated-power basis functions
    ACT, ISBIAS, ISLAST = "relu", 1, 0
    N = 1000                             # not a multiple of tile_m -> exercises tail padding

    # deterministic parameter init (torch.rand -> uniform[0,1))
    key, kw, kb, kt_in, kf_in = jax.random.split(key, 5)
    weight = jax.random.uniform(kw, (IND, OUTD, NUM_BASIS), dtype=jnp.float32)
    bias = jax.random.uniform(kb, (OUTD, NUM_BASIS), dtype=jnp.float32)

    # input: column 0 = treatment in [0,1], remaining columns = features
    t_col = jax.random.uniform(kt_in, (N, 1), dtype=jnp.float32)
    feats = jax.random.normal(kf_in, (N, IND), dtype=jnp.float32)
    x = jnp.concatenate([t_col, feats], axis=1)                        # (1000, 64)

    out = dynamic_fc_forward(x, weight, bias, degree=DEGREE, knots=KNOTS,
                             act=ACT, isbias=ISBIAS, islastlayer=ISLAST, tile_m=256)
    out = jax.block_until_ready(out)

    ref = dynamic_fc_reference(x, weight, bias, degree=DEGREE, knots=KNOTS,
                               act=ACT, isbias=ISBIAS, islastlayer=ISLAST)
    np.testing.assert_allclose(np.asarray(out), np.asarray(ref), rtol=1e-4, atol=1e-4)

    print("KERNEL_OK")
</pallas_src>

<mosaic_0001>
module attributes {stable_mosaic.version = 11 : i64} {
  func.func @dynamic_fc_kernel(%arg0: i32, %arg1: memref<256x64xf32, #tpu.memory_space<vmem>>, %arg2: memref<64x640xf32, #tpu.memory_space<vmem>>, %arg3: memref<8x128xf32, #tpu.memory_space<vmem>>, %arg4: memref<256x128xf32, #tpu.memory_space<vmem>>) attributes {dimension_semantics = [#tpu.dimension_semantics<parallel>], iteration_bounds = array<i64: 4>, scalar_prefetch = 0 : i64, scratch_operands = 0 : i64, tpu.core_type = #tpu.core_type<tc>, window_params = [{transform_indices = @transform_0, window_bounds = array<i64: 256, 64>}, {pipeline_mode = #tpu.pipeline_mode<synchronous>, transform_indices = @transform_1, window_bounds = array<i64: 64, 640>}, {pipeline_mode = #tpu.pipeline_mode<synchronous>, transform_indices = @transform_2, window_bounds = array<i64: 8, 128>}, {transform_indices = @transform_3, window_bounds = array<i64: 256, 128>}]} {
    %c0 = arith.constant 0 : index
    %c0_0 = arith.constant 0 : index
    %0 = vector.load %arg1[%c0, %c0_0] : memref<256x64xf32, #tpu.memory_space<vmem>>, vector<256x64xf32>
    %1 = vector.extract_strided_slice %0 {offsets = [0, 0], sizes = [256, 1], strides = [1, 1]} : vector<256x64xf32> to vector<256x1xf32>
    %cst = arith.constant 1.000000e+00 : f32
    %2 = vector.broadcast %cst : f32 to vector<256x1xf32>
    %3 = arith.mulf %2, %1 : vector<256x1xf32>
    %4 = arith.mulf %3, %1 : vector<256x1xf32>
    %cst_1 = arith.constant 0.333333343 : f32
    %5 = vector.broadcast %cst_1 : f32 to vector<256x1xf32>
    %6 = arith.subf %1, %5 : vector<256x1xf32>
    %cst_2 = arith.constant 0.000000e+00 : f32
    %7 = vector.broadcast %cst_2 : f32 to vector<256x1xf32>
    %8 = arith.maximumf %6, %7 : vector<256x1xf32>
    %9 = arith.mulf %8, %8 : vector<256x1xf32>
    %cst_3 = arith.constant 0.666666686 : f32
    %10 = vector.broadcast %cst_3 : f32 to vector<256x1xf32>
    %11 = arith.subf %1, %10 : vector<256x1xf32>
    %cst_4 = arith.constant 0.000000e+00 : f32
    %12 = vector.broadcast %cst_4 : f32 to vector<256x1xf32>
    %13 = arith.maximumf %11, %12 : vector<256x1xf32>
    %14 = arith.mulf %13, %13 : vector<256x1xf32>
    %c0_5 = arith.constant 0 : index
    %c0_6 = arith.constant 0 : index
    %15 = vector.load %arg2[%c0_5, %c0_6] : memref<64x640xf32, #tpu.memory_space<vmem>>, vector<64x640xf32>
    %cst_7 = arith.constant dense<0.000000e+00> : vector<256x640xf32>
    %16 = tpu.matmul %0, %15, %cst_7 {dimension_numbers = #tpu.dot_dimension_numbers<[1], [0], [0], [1], [0, 0, 1, 1], [], []>} : vector<256x64xf32>, vector<64x640xf32>, vector<256x640xf32> -> vector<256x640xf32>
    %cst_8 = arith.constant 0.000000e+00 : f32
    %17 = vector.broadcast %cst_8 : f32 to vector<256x128xf32>
    %18 = vector.extract_strided_slice %16 {offsets = [0, 0], sizes = [256, 128], strides = [1, 1]} : vector<256x640xf32> to vector<256x128xf32>
    %c0_9 = arith.constant 0 : index
    %c0_10 = arith.constant 0 : index
    %19 = vector.load %arg3[%c0_9, %c0_10] : memref<8x128xf32, #tpu.memory_space<vmem>>, vector<1x128xf32>
    %20 = vector.broadcast %19 : vector<1x128xf32> to vector<256x128xf32>
    %21 = arith.addf %18, %20 : vector<256x128xf32>
    %22 = vector.broadcast %2 : vector<256x1xf32> to vector<256x128xf32>
    %23 = arith.mulf %22, %21 : vector<256x128xf32>
    %24 = arith.addf %17, %23 : vector<256x128xf32>
    %25 = vector.extract_strided_slice %16 {offsets = [0, 128], sizes = [256, 128], strides = [1, 1]} : vector<256x640xf32> to vector<256x128xf32>
    %c1 = arith.constant 1 : index
    %c0_11 = arith.constant 0 : index
    %26 = vector.load %arg3[%c1, %c0_11] : memref<8x128xf32, #tpu.memory_space<vmem>>, vector<1x128xf32>
    %27 = vector.broadcast %26 : vector<1x128xf32> to vector<256x128xf32>
    %28 = arith.addf %25, %27 : vector<256x128xf32>
    %29 = vector.broadcast %3 : vector<256x1xf32> to vector<256x128xf32>
    %30 = arith.mulf %29, %28 : vector<256x128xf32>
    %31 = arith.addf %24, %30 : vector<256x128xf32>
    %32 = vector.extract_strided_slice %16 {offsets = [0, 256], sizes = [256, 128], strides = [1, 1]} : vector<256x640xf32> to vector<256x128xf32>
    %c2 = arith.constant 2 : index
    %c0_12 = arith.constant 0 : index
    %33 = vector.load %arg3[%c2, %c0_12] : memref<8x128xf32, #tpu.memory_space<vmem>>, vector<1x128xf32>
    %34 = vector.broadcast %33 : vector<1x128xf32> to vector<256x128xf32>
    %35 = arith.addf %32, %34 : vector<256x128xf32>
    %36 = vector.broadcast %4 : vector<256x1xf32> to vector<256x128xf32>
    %37 = arith.mulf %36, %35 : vector<256x128xf32>
    %38 = arith.addf %31, %37 : vector<256x128xf32>
    %39 = vector.extract_strided_slice %16 {offsets = [0, 384], sizes = [256, 128], strides = [1, 1]} : vector<256x640xf32> to vector<256x128xf32>
    %c3 = arith.constant 3 : index
    %c0_13 = arith.constant 0 : index
    %40 = vector.load %arg3[%c3, %c0_13] : memref<8x128xf32, #tpu.memory_space<vmem>>, vector<1x128xf32>
    %41 = vector.broadcast %40 : vector<1x128xf32> to vector<256x128xf32>
    %42 = arith.addf %39, %41 : vector<256x128xf32>
    %43 = vector.broadcast %9 : vector<256x1xf32> to vector<256x128xf32>
    %44 = arith.mulf %43, %42 : vector<256x128xf32>
    %45 = arith.addf %38, %44 : vector<256x128xf32>
    %46 = vector.extract_strided_slice %16 {offsets = [0, 512], sizes = [256, 128], strides = [1, 1]} : vector<256x640xf32> to vector<256x128xf32>
    %c4 = arith.constant 4 : index
    %c0_14 = arith.constant 0 : index
    %47 = vector.load %arg3[%c4, %c0_14] : memref<8x128xf32, #tpu.memory_space<vmem>>, vector<1x128xf32>
    %48 = vector.broadcast %47 : vector<1x128xf32> to vector<256x128xf32>
    %49 = arith.addf %46, %48 : vector<256x128xf32>
    %50 = vector.broadcast %14 : vector<256x1xf32> to vector<256x128xf32>
    %51 = arith.mulf %50, %49 : vector<256x128xf32>
    %52 = arith.addf %45, %51 : vector<256x128xf32>
    %cst_15 = arith.constant 0.000000e+00 : f32
    %53 = vector.broadcast %cst_15 : f32 to vector<256x128xf32>
    %54 = arith.maximumf %52, %53 : vector<256x128xf32>
    %55 = tpu.iota {dimensions = array<i32: 1>} : vector<256x128xi32>
    %c0_i32 = arith.constant 0 : i32
    %56 = vector.broadcast %c0_i32 : i32 to vector<256x128xi32>
    %57 = arith.cmpi eq, %55, %56 : vector<256x128xi32>
    %58 = vector.shape_cast %1 : vector<256x1xf32> to vector<256x1xf32>
    %59 = vector.broadcast %58 : vector<256x1xf32> to vector<256x128xf32>
    %60 = arith.select %57, %59, %54 : vector<256x128xi1>, vector<256x128xf32>
    %c0_16 = arith.constant 0 : index
    %c0_17 = arith.constant 0 : index
    %61 = vector.load %arg4[%c0_16, %c0_17] : memref<256x128xf32, #tpu.memory_space<vmem>>, vector<256x128xf32>
    tpu.vector_store %arg4[%c0_16, %c0_17], %60 {strides = array<i32>} : memref<256x128xf32, #tpu.memory_space<vmem>>, vector<256x128xf32>,
    return
  }
  func.func @transform_0(%arg0: i32) -> (i32, i32) {
    %c0_i32 = arith.constant 0 : i32
    %c0_i32_0 = arith.constant 0 : i32
    return %arg0, %c0_i32 : i32, i32
  }
  func.func @transform_1(%arg0: i32) -> (i32, i32) {
    %c0_i32 = arith.constant 0 : i32
    %c0_i32_0 = arith.constant 0 : i32
    %c0_i32_1 = arith.constant 0 : i32
    return %c0_i32, %c0_i32_0 : i32, i32
  }
  func.func @transform_2(%arg0: i32) -> (i32, i32) {
    %c0_i32 = arith.constant 0 : i32
    %c0_i32_0 = arith.constant 0 : i32
    %c0_i32_1 = arith.constant 0 : i32
    return %c0_i32, %c0_i32_0 : i32, i32
  }
  func.func @transform_3(%arg0: i32) -> (i32, i32) {
    %c0_i32 = arith.constant 0 : i32
    %c0_i32_0 = arith.constant 0 : i32
    return %arg0, %c0_i32 : i32, i32
  }
}

</mosaic_0001>

<llo_original>
// kernel: tpu_custom_call.1
$region0: #{tpu_custom_call.1}
  #allocation0 [shape = 'u32[]', space=smem, size = 0x4, offset = 0x4, fixed_abs, tag = 'smem constant byte address 0x4 - core index']
  #allocation1 [shape = 'u32[144,128]{1,0:T(1,128)}', space=vmem, size = 0x12000, scoped, tag = 'internal scratch']
  %s0 = inlined_call_operand.vmem [shape: f32[1024,64], index: 0, kind: input, shape index: {}]
  %s1 = inlined_call_operand.vmem [shape: f32[64,640], index: 1, kind: input, shape index: {}]
  %s2 = inlined_call_operand.vmem [shape: f32[8,128], index: 2, kind: input, shape index: {}]
  %s3 = inlined_call_operand.hbm [shape: f32[1024,128], index: 3, kind: output, shape index: {}]
  %s4 = sld [smem:[#allocation0]]
  $region45: #{tpu_custom_call.1} parent=0
    _
  %s6 = ssub.s32 1, %s4
  %s7 = scalar_select 0, %s6, %s4
  $region1: #{tpu_custom_call.1} parent=0
    #allocation2 [shape = 'u8[262144]{0}', space=vmem, size = 0x40000, scoped, tag = 'output window, operand 0']
    #allocation3 [shape = 's32[2]{0}', space=sflag, size = 0x8, scoped, tag = 'scoped memory for tpu_custom_call.1']
    %8 = vsyncpa [#allocation3], 0
    %s9 = scalar_lea.sflag [#allocation3], 1
    %10 = vsyncpa %s9, 0
    loop: start=0, step=1, limit=6
    $region2: #{tpu_custom_call.1} parent=1 // loop_pre_header
      _
    $region3: #{tpu_custom_call.1} parent=1 // loop_header
      %s12 = sphi 0, %s16
      %p13 = scmp.ge.s32.totalorder %s12, 6
      %s22 = sphi 0, %s24
      %s25 = sphi 0, %s22
      %s26 = sphi 0, %s25
      %s42 = sphi 0, %s26
      %s46 = sphi 0, %s46
      %s48 = sphi 0, %s46
      %s49 = sphi 0, %s48
      %s63 = sphi 0, %s49
      %s67 = sphi 0, %s67
      %s69 = sphi 0, %s67
      %s70 = sphi 0, %s69
      %s84 = sphi 0, %s70
      %s90 = sphi 0, %s92
      %s93 = sphi 0, %s90
      %s94 = sphi 0, %s93
      %s110 = sphi 0, %s94
    $region4: #{tpu_custom_call.1} parent=1 // loop_header_branch
      %15 = sbr.rel (%p13) target = $region8
    $region5: #{tpu_custom_call.1} parent=1 // loop_body
      %s17 = ssub.s32 %s12, 1
      %s18 = ssub.s32 %s12, 2
      %s19 = sadd.s32 %s12, 1
      %s20 = ssub.s32 %s12, %s19
      %p21 = scmp.eq.s32.totalorder %s20, 0
      %s23 = sadd.s32 %s22, 1
      %s24 = scalar_select %p21, %s22, %s23
      %p27 = pneg %p21
      %p28 = scmp.eq.s32.totalorder %s12, 3
      %p29 = por %p27, %p28
      %p30 = scmp.ne.s32.totalorder %s22, %s25
      %p31 = scmp.eq.s32.totalorder %s12, 0
      %p32 = por %p30, %p31
      %p33 = scmp.ne.s32.totalorder %s22, %s25
      %p34 = scmp.eq.s32.totalorder %s17, 3
      %p35 = por %p33, %p34
      %p36 = scmp.ne.s32.totalorder %s25, %s26
      %p37 = scmp.eq.s32.totalorder %s17, 0
      %p38 = por %p36, %p37
      %p39 = scmp.ne.s32.totalorder %s25, %s26
      %p40 = scmp.eq.s32.totalorder %s18, 3
      %p41 = por %p39, %p40
      %p43 = scmp.ne.s32.totalorder %s26, %s42
      %p44 = scmp.eq.s32.totalorder %s18, 0
      %p45 = por %p43, %p44
      %s47 = sadd.s32 %s46, 1
      %p50 = scmp.eq.s32.totalorder %s12, 3
      %p51 = scmp.ne.s32.totalorder %s46, %s48
      %p52 = scmp.eq.s32.totalorder %s12, 0
      %p53 = por %p51, %p52
      %p54 = scmp.ne.s32.totalorder %s46, %s48
      %p55 = scmp.eq.s32.totalorder %s17, 3
      %p56 = por %p54, %p55
      %p57 = scmp.ne.s32.totalorder %s48, %s49
      %p58 = scmp.eq.s32.totalorder %s17, 0
      %p59 = por %p57, %p58
      %p60 = scmp.ne.s32.totalorder %s48, %s49
      %p61 = scmp.eq.s32.totalorder %s18, 3
      %p62 = por %p60, %p61
      %p64 = scmp.ne.s32.totalorder %s49, %s63
      %p65 = scmp.eq.s32.totalorder %s18, 0
      %p66 = por %p64, %p65
      %s68 = sadd.s32 %s67, 1
      %p71 = scmp.eq.s32.totalorder %s12, 3
      %p72 = scmp.ne.s32.totalorder %s67, %s69
      %p73 = scmp.eq.s32.totalorder %s12, 0
      %p74 = por %p72, %p73
      %p75 = scmp.ne.s32.totalorder %s67, %s69
      %p76 = scmp.eq.s32.totalorder %s17, 3
      %p77 = por %p75, %p76
      %p78 = scmp.ne.s32.totalorder %s69, %s70
      %p79 = scmp.eq.s32.totalorder %s17, 0
      %p80 = por %p78, %p79
      %p81 = scmp.ne.s32.totalorder %s69, %s70
      %p82 = scmp.eq.s32.totalorder %s18, 3
      %p83 = por %p81, %p82
      %p85 = scmp.ne.s32.totalorder %s70, %s84
      %p86 = scmp.eq.s32.totalorder %s18, 0
      %p87 = por %p85, %p86
      %s88 = ssub.s32 %s12, %s19
      %p89 = scmp.eq.s32.totalorder %s88, 0
      %s91 = sadd.s32 %s90, 1
      %s92 = scalar_select %p89, %s90, %s91
      %p95 = pneg %p89
      %p96 = scmp.eq.s32.totalorder %s12, 3
      %p97 = por %p95, %p96
      %p98 = scmp.ne.s32.totalorder %s90, %s93
      %p99 = scmp.eq.s32.totalorder %s12, 0
      %p100 = por %p98, %p99
      %p101 = scmp.ne.s32.totalorder %s90, %s93
      %p102 = scmp.eq.s32.totalorder %s17, 3
      %p103 = por %p101, %p102
      %p104 = scmp.ne.s32.totalorder %s93, %s94
      %p105 = scmp.eq.s32.totalorder %s17, 0
      %p106 = por %p104, %p105
      %p107 = scmp.ne.s32.totalorder %s93, %s94
      %p108 = scmp.eq.s32.totalorder %s18, 3
      %p109 = por %p107, %p108
      %p111 = scmp.ne.s32.totalorder %s94, %s110
      %p112 = scmp.eq.s32.totalorder %s18, 0
      %p113 = por %p111, %p112
      %p114 = scmp.le.s32.totalorder 1, %s12
      %p115 = scmp.lt.s32.totalorder %s12, 5
      %p116 = pnand %p114, %p115
      %p117 = pneg %p116
      // Predicated region
      $region9: #{tpu_custom_call.1} parent=5 // pred_check
        _
      $region10: #{tpu_custom_call.1} parent=5 // pred_check_branch
        %119 = sbr.rel (%p116) target = $region12
      $region11: #{tpu_custom_call.1} parent=5 // pred_region
        %s120 = ssub.s32 %s12, 1
        // Predicated region
        $region13: #{tpu_custom_call.1} parent=11 // pred_check
          %p121 = pneg %p59
        $region14: #{tpu_custom_call.1} parent=11 // pred_check_branch
          %123 = sbr.rel (%p121) target = $region16
        $region15: #{tpu_custom_call.1} parent=11 // pred_region
          _
        $region16: #{tpu_custom_call.1} parent=11 // pred_fallthru
          _
        // Predicated region
        $region17: #{tpu_custom_call.1} parent=11 // pred_check
          %p124 = pneg %p80
        $region18: #{tpu_custom_call.1} parent=11 // pred_check_branch
          %126 = sbr.rel (%p124) target = $region20
        $region19: #{tpu_custom_call.1} parent=11 // pred_region
          _
        $region20: #{tpu_custom_call.1} parent=11 // pred_fallthru
          _
      $region12: #{tpu_custom_call.1} parent=5 // pred_fallthru
        _
      %p127 = scmp.lt.s32.totalorder %s12, 4
      // Predicated region
      $region21: #{tpu_custom_call.1} parent=5 // pred_check
        %p128 = pneg %p127
      $region22: #{tpu_custom_call.1} parent=5 // pred_check_branch
        %130 = sbr.rel (%p128) target = $region24
      $region23: #{tpu_custom_call.1} parent=5 // pred_region
        // Predicated region
        $region25: #{tpu_custom_call.1} parent=23 // pred_check
          %p131 = pneg %p32
        $region26: #{tpu_custom_call.1} parent=23 // pred_check_branch
          %133 = sbr.rel (%p131) target = $region28
        $region27: #{tpu_custom_call.1} parent=23 // pred_region
          %s134 = smul.u32 32, %s12
          %p135 = scmp.lt.s32.totalorder %s134, 127
          %s136 = scalar_select %p135, %s134, 127
          %s137 = smul.addr %s136, 8
          %s138 = scalar_lea.vmem %s0, %s137
          %s139 = smul.u32 32, %s12
        $region28: #{tpu_custom_call.1} parent=23 // pred_fallthru
          _
      $region24: #{tpu_custom_call.1} parent=5 // pred_fallthru
        _
      %p140 = scmp.le.s32.totalorder 1, %s12
      %p141 = scmp.lt.s32.totalorder %s12, 5
      %p142 = pnand %p140, %p141
      %p143 = pneg %p142
      // Predicated region
      $region29: #{tpu_custom_call.1} parent=5 // pred_check
        _
      $region30: #{tpu_custom_call.1} parent=5 // pred_check_branch
        %145 = sbr.rel (%p142) target = $region32
      $region31: #{tpu_custom_call.1} parent=5 // pred_region
        %s146 = ssub.s32 %s12, 1
        %s147 = smul.u32 32, %s17
        %p148 = scmp.lt.s32.totalorder %s147, 127
        %s149 = scalar_select %p148, %s147, 127
        %s150 = smul.addr %s149, 8
        %s151 = scalar_lea.vmem %s0, %s150
        %p152 = pneg %p38
        %p153 = pneg %p35
        %p154 = pneg %p59
        %p155 = pneg %p56
        %p156 = pneg %p80
        %p157 = pneg %p77
        %p158 = pneg %p106
        %p159 = pneg %p103
        %s160 = sand.u32 %s93, 1
        %s161 = scalar_lea.sflag [#allocation3], %s160
        %s162 = sand.u32 %s93, 1
        %s163 = smul.addr %s162, 256
        %s164 = scalar_lea.vmem [#allocation2], %s163
        %s165 = smul.u32 32, %s17
        %p166 = scmp.lt.s32.totalorder %s165, 127
        %s167 = scalar_select %p166, %s165, 127
        %s168 = smul.addr %s167, 8
        %s169 = scalar_lea.vmem %s0, %s168
        %s170 = smul.u32 32, %s17
        %s171 = smul.u32 32, %s17
        %v172 = vld [vmem:[%s169] sm:$0xff]
        %v173 = vld [vmem:[%s169 + $0x8] sm:$0xff]
        %v174 = vld [vmem:[%s169 + $0x10] sm:$0xff]
        %v175 = vld [vmem:[%s169 + $0x18] sm:$0xff]
        %v176 = vld [vmem:[%s169 + $0x20] sm:$0xff]
        %v177 = vld [vmem:[%s169 + $0x28] sm:$0xff]
        %v178 = vld [vmem:[%s169 + $0x30] sm:$0xff]
        %v179 = vld [vmem:[%s169 + $0x38] sm:$0xff]
        %v180 = vld [vmem:[%s169 + $0x40] sm:$0xff]
        %v181 = vld [vmem:[%s169 + $0x48] sm:$0xff]
        %v182 = vld [vmem:[%s169 + $0x50] sm:$0xff]
        %v183 = vld [vmem:[%s169 + $0x58] sm:$0xff]
        %v184 = vld [vmem:[%s169 + $0x60] sm:$0xff]
        %v185 = vld [vmem:[%s169 + $0x68] sm:$0xff]
        %v186 = vld [vmem:[%s169 + $0x70] sm:$0xff]
        %v187 = vld [vmem:[%s169 + $0x78] sm:$0xff]
        %v188 = vld [vmem:[%s169 + $0x80] sm:$0xff]
        %v189 = vld [vmem:[%s169 + $0x88] sm:$0xff]
        %v190 = vld [vmem:[%s169 + $0x90] sm:$0xff]
        %v191 = vld [vmem:[%s169 + $0x98] sm:$0xff]
        %v192 = vld [vmem:[%s169 + $0xa0] sm:$0xff]
        %v193 = vld [vmem:[%s169 + $0xa8] sm:$0xff]
        %v194 = vld [vmem:[%s169 + $0xb0] sm:$0xff]
        %v195 = vld [vmem:[%s169 + $0xb8] sm:$0xff]
        %v196 = vld [vmem:[%s169 + $0xc0] sm:$0xff]
        %v197 = vld [vmem:[%s169 + $0xc8] sm:$0xff]
        %v198 = vld [vmem:[%s169 + $0xd0] sm:$0xff]
        %v199 = vld [vmem:[%s169 + $0xd8] sm:$0xff]
        %v200 = vld [vmem:[%s169 + $0xe0] sm:$0xff]
        %v201 = vld [vmem:[%s169 + $0xe8] sm:$0xff]
        %v202 = vld [vmem:[%s169 + $0xf0] sm:$0xff]
        %v203 = vld [vmem:[%s169 + $0xf8] sm:$0xff]
        %v204 = vmul.f32 %v172, %v172
        %v205 = vmul.f32 %v173, %v173
        %v206 = vmul.f32 %v174, %v174
        %v207 = vmul.f32 %v175, %v175
        %v208 = vmul.f32 %v176, %v176
        %v209 = vmul.f32 %v177, %v177
        %v210 = vmul.f32 %v178, %v178
        %v211 = vmul.f32 %v179, %v179
        %v212 = vmul.f32 %v180, %v180
        %v213 = vmul.f32 %v181, %v181
        %v214 = vmul.f32 %v182, %v182
        %v215 = vmul.f32 %v183, %v183
        %v216 = vmul.f32 %v184, %v184
        %v217 = vmul.f32 %v185, %v185
        %v218 = vmul.f32 %v186, %v186
        %v219 = vmul.f32 %v187, %v187
        %v220 = vmul.f32 %v188, %v188
        %v221 = vmul.f32 %v189, %v189
        %v222 = vmul.f32 %v190, %v190
        %v223 = vmul.f32 %v191, %v191
        %v224 = vmul.f32 %v192, %v192
        %v225 = vmul.f32 %v193, %v193
        %v226 = vmul.f32 %v194, %v194
        %v227 = vmul.f32 %v195, %v195
        %v228 = vmul.f32 %v196, %v196
        %v229 = vmul.f32 %v197, %v197
        %v230 = vmul.f32 %v198, %v198
        %v231 = vmul.f32 %v199, %v199
        %v232 = vmul.f32 %v200, %v200
        %v233 = vmul.f32 %v201, %v201
        %v234 = vmul.f32 %v202, %v202
        %v235 = vmul.f32 %v203, %v203
        %v236 = vsub.f32 %v172, 0.33333334
        %v237 = vsub.f32 %v173, 0.33333334
        %v238 = vsub.f32 %v174, 0.33333334
        %v239 = vsub.f32 %v175, 0.33333334
        %v240 = vsub.f32 %v176, 0.33333334
        %v241 = vsub.f32 %v177, 0.33333334
        %v242 = vsub.f32 %v178, 0.33333334
        %v243 = vsub.f32 %v179, 0.33333334
        %v244 = vsub.f32 %v180, 0.33333334
        %v245 = vsub.f32 %v181, 0.33333334
        %v246 = vsub.f32 %v182, 0.33333334
        %v247 = vsub.f32 %v183, 0.33333334
        %v248 = vsub.f32 %v184, 0.33333334
        %v249 = vsub.f32 %v185, 0.33333334
        %v250 = vsub.f32 %v186, 0.33333334
        %v251 = vsub.f32 %v187, 0.33333334
        %v252 = vsub.f32 %v188, 0.33333334
        %v253 = vsub.f32 %v189, 0.33333334
        %v254 = vsub.f32 %v190, 0.33333334
        %v255 = vsub.f32 %v191, 0.33333334
        %v256 = vsub.f32 %v192, 0.33333334
        %v257 = vsub.f32 %v193, 0.33333334
        %v258 = vsub.f32 %v194, 0.33333334
        %v259 = vsub.f32 %v195, 0.33333334
        %v260 = vsub.f32 %v196, 0.33333334
        %v261 = vsub.f32 %v197, 0.33333334
        %v262 = vsub.f32 %v198, 0.33333334
        %v263 = vsub.f32 %v199, 0.33333334
        %v264 = vsub.f32 %v200, 0.33333334
        %v265 = vsub.f32 %v201, 0.33333334
        %v266 = vsub.f32 %v202, 0.33333334
        %v267 = vsub.f32 %v203, 0.33333334
        %v268 = vmax.f32 %v236, 0.0
        %v269 = vmax.f32 %v237, 0.0
        %v270 = vmax.f32 %v238, 0.0
        %v271 = vmax.f32 %v239, 0.0
        %v272 = vmax.f32 %v240, 0.0
        %v273 = vmax.f32 %v241, 0.0
        %v274 = vmax.f32 %v242, 0.0
        %v275 = vmax.f32 %v243, 0.0
        %v276 = vmax.f32 %v244, 0.0
        %v277 = vmax.f32 %v245, 0.0
        %v278 = vmax.f32 %v246, 0.0
        %v279 = vmax.f32 %v247, 0.0
        %v280 = vmax.f32 %v248, 0.0
        %v281 = vmax.f32 %v249, 0.0
        %v282 = vmax.f32 %v250, 0.0
        %v283 = vmax.f32 %v251, 0.0
        %v284 = vmax.f32 %v252, 0.0
        %v285 = vmax.f32 %v253, 0.0
        %v286 = vmax.f32 %v254, 0.0
        %v287 = vmax.f32 %v255, 0.0
        %v288 = vmax.f32 %v256, 0.0
        %v289 = vmax.f32 %v257, 0.0
        %v290 = vmax.f32 %v258, 0.0
        %v291 = vmax.f32 %v259, 0.0
        %v292 = vmax.f32 %v260, 0.0
        %v293 = vmax.f32 %v261, 0.0
        %v294 = vmax.f32 %v262, 0.0
        %v295 = vmax.f32 %v263, 0.0
        %v296 = vmax.f32 %v264, 0.0
        %v297 = vmax.f32 %v265, 0.0
        %v298 = vmax.f32 %v266, 0.0
        %v299 = vmax.f32 %v267, 0.0
        %v300 = vmul.f32 %v268, %v268
        %v301 = vmul.f32 %v269, %v269
        %v302 = vmul.f32 %v270, %v270
        %v303 = vmul.f32 %v271, %v271
        %v304 = vmul.f32 %v272, %v272
        %v305 = vmul.f32 %v273, %v273
        %v306 = vmul.f32 %v274, %v274
        %v307 = vmul.f32 %v275, %v275
        %v308 = vmul.f32 %v276, %v276
        %v309 = vmul.f32 %v277, %v277
        %v310 = vmul.f32 %v278, %v278
        %v311 = vmul.f32 %v279, %v279
        %v312 = vmul.f32 %v280, %v280
        %v313 = vmul.f32 %v281, %v281
        %v314 = vmul.f32 %v282, %v282
        %v315 = vmul.f32 %v283, %v283
        %v316 = vmul.f32 %v284, %v284
        %v317 = vmul.f32 %v285, %v285
        %v318 = vmul.f32 %v286, %v286
        %v319 = vmul.f32 %v287, %v287
        %v320 = vmul.f32 %v288, %v288
        %v321 = vmul.f32 %v289, %v289
        %v322 = vmul.f32 %v290, %v290
        %v323 = vmul.f32 %v291, %v291
        %v324 = vmul.f32 %v292, %v292
        %v325 = vmul.f32 %v293, %v293
        %v326 = vmul.f32 %v294, %v294
        %v327 = vmul.f32 %v295, %v295
        %v328 = vmul.f32 %v296, %v296
        %v329 = vmul.f32 %v297, %v297
        %v330 = vmul.f32 %v298, %v298
        %v331 = vmul.f32 %v299, %v299
        %v332 = vsub.f32 %v172, 0.6666667
        %v333 = vsub.f32 %v173, 0.6666667
        %v334 = vsub.f32 %v174, 0.6666667
        %v335 = vsub.f32 %v175, 0.6666667
        %v336 = vsub.f32 %v176, 0.6666667
        %v337 = vsub.f32 %v177, 0.6666667
        %v338 = vsub.f32 %v178, 0.6666667
        %v339 = vsub.f32 %v179, 0.6666667
        %v340 = vsub.f32 %v180, 0.6666667
        %v341 = vsub.f32 %v181, 0.6666667
        %v342 = vsub.f32 %v182, 0.6666667
        %v343 = vsub.f32 %v183, 0.6666667
        %v344 = vsub.f32 %v184, 0.6666667
        %v345 = vsub.f32 %v185, 0.6666667
        %v346 = vsub.f32 %v186, 0.6666667
        %v347 = vsub.f32 %v187, 0.6666667
        %v348 = vsub.f32 %v188, 0.6666667
        %v349 = vsub.f32 %v189, 0.6666667
        %v350 = vsub.f32 %v190, 0.6666667
        %v351 = vsub.f32 %v191, 0.6666667
        %v352 = vsub.f32 %v192, 0.6666667
        %v353 = vsub.f32 %v193, 0.6666667
        %v354 = vsub.f32 %v194, 0.6666667
        %v355 = vsub.f32 %v195, 0.6666667
        %v356 = vsub.f32 %v196, 0.6666667
        %v357 = vsub.f32 %v197, 0.6666667
        %v358 = vsub.f32 %v198, 0.6666667
        %v359 = vsub.f32 %v199, 0.6666667
        %v360 = vsub.f32 %v200, 0.6666667
        %v361 = vsub.f32 %v201, 0.6666667
        %v362 = vsub.f32 %v202, 0.6666667
        %v363 = vsub.f32 %v203, 0.6666667
        %v364 = vmax.f32 %v332, 0.0
        %v365 = vmax.f32 %v333, 0.0
        %v366 = vmax.f32 %v334, 0.0
        %v367 = vmax.f32 %v335, 0.0
        %v368 = vmax.f32 %v336, 0.0
        %v369 = vmax.f32 %v337, 0.0
        %v370 = vmax.f32 %v338, 0.0
        %v371 = vmax.f32 %v339, 0.0
        %v372 = vmax.f32 %v340, 0.0
        %v373 = vmax.f32 %v341, 0.0
        %v374 = vmax.f32 %v342, 0.0
        %v375 = vmax.f32 %v343, 0.0
        %v376 = vmax.f32 %v344, 0.0
        %v377 = vmax.f32 %v345, 0.0
        %v378 = vmax.f32 %v346, 0.0
        %v379 = vmax.f32 %v347, 0.0
        %v380 = vmax.f32 %v348, 0.0
        %v381 = vmax.f32 %v349, 0.0
        %v382 = vmax.f32 %v350, 0.0
        %v383 = vmax.f32 %v351, 0.0
        %v384 = vmax.f32 %v352, 0.0
        %v385 = vmax.f32 %v353, 0.0
        %v386 = vmax.f32 %v354, 0.0
        %v387 = vmax.f32 %v355, 0.0
        %v388 = vmax.f32 %v356, 0.0
        %v389 = vmax.f32 %v357, 0.0
        %v390 = vmax.f32 %v358, 0.0
        %v391 = vmax.f32 %v359, 0.0
        %v392 = vmax.f32 %v360, 0.0
        %v393 = vmax.f32 %v361, 0.0
        %v394 = vmax.f32 %v362, 0.0
        %v395 = vmax.f32 %v363, 0.0
        %v396 = vmul.f32 %v364, %v364
        %v397 = vmul.f32 %v365, %v365
        %v398 = vmul.f32 %v366, %v366
        %v399 = vmul.f32 %v367, %v367
        %v400 = vmul.f32 %v368, %v368
        %v401 = vmul.f32 %v369, %v369
        %v402 = vmul.f32 %v370, %v370
        %v403 = vmul.f32 %v371, %v371
        %v404 = vmul.f32 %v372, %v372
        %v405 = vmul.f32 %v373, %v373
        %v406 = vmul.f32 %v374, %v374
        %v407 = vmul.f32 %v375, %v375
        %v408 = vmul.f32 %v376, %v376
        %v409 = vmul.f32 %v377, %v377
        %v410 = vmul.f32 %v378, %v378
        %v411 = vmul.f32 %v379, %v379
        %v412 = vmul.f32 %v380, %v380
        %v413 = vmul.f32 %v381, %v381
        %v414 = vmul.f32 %v382, %v382
        %v415 = vmul.f32 %v383, %v383
        %v416 = vmul.f32 %v384, %v384
        %v417 = vmul.f32 %v385, %v385
        %v418 = vmul.f32 %v386, %v386
        %v419 = vmul.f32 %v387, %v387
        %v420 = vmul.f32 %v388, %v388
        %v421 = vmul.f32 %v389, %v389
        %v422 = vmul.f32 %v390, %v390
        %v423 = vmul.f32 %v391, %v391
        %v424 = vmul.f32 %v392, %v392
        %v425 = vmul.f32 %v393, %v393
        %v426 = vmul.f32 %v394, %v394
        %v427 = vmul.f32 %v395, %v395
        %v428 = vld [vmem:[%s1] sm:$0xff]
        %v429 = vld [vmem:[%s1 + $0x8] sm:$0xff]
        %v430 = vld [vmem:[%s1 + $0x10] sm:$0xff]
        %v431 = vld [vmem:[%s1 + $0x18] sm:$0xff]
        %v432 = vld [vmem:[%s1 + $0x20] sm:$0xff]
        %v433 = vld [vmem:[%s1 + $0x28] sm:$0xff]
        %v434 = vld [vmem:[%s1 + $0x30] sm:$0xff]
        %v435 = vld [vmem:[%s1 + $0x38] sm:$0xff]
        %v436 = vld [vmem:[%s1 + $0x40] sm:$0xff]
        %v437 = vld [vmem:[%s1 + $0x48] sm:$0xff]
        %v438 = vld [vmem:[%s1 + $0x50] sm:$0xff]
        %v439 = vld [vmem:[%s1 + $0x58] sm:$0xff]
        %v440 = vld [vmem:[%s1 + $0x60] sm:$0xff]
        %v441 = vld [vmem:[%s1 + $0x68] sm:$0xff]
        %v442 = vld [vmem:[%s1 + $0x70] sm:$0xff]
        %v443 = vld [vmem:[%s1 + $0x78] sm:$0xff]
        %v444 = vld [vmem:[%s1 + $0x80] sm:$0xff]
        %v445 = vld [vmem:[%s1 + $0x88] sm:$0xff]
        %v446 = vld [vmem:[%s1 + $0x90] sm:$0xff]
        %v447 = vld [vmem:[%s1 + $0x98] sm:$0xff]
        %v448 = vld [vmem:[%s1 + $0xa0] sm:$0xff]
        %v449 = vld [vmem:[%s1 + $0xa8] sm:$0xff]
        %v450 = vld [vmem:[%s1 + $0xb0] sm:$0xff]
        %v451 = vld [vmem:[%s1 + $0xb8] sm:$0xff]
        %v452 = vld [vmem:[%s1 + $0xc0] sm:$0xff]
        %v453 = vld [vmem:[%s1 + $0xc8] sm:$0xff]
        %v454 = vld [vmem:[%s1 + $0xd0] sm:$0xff]
        %v455 = vld [vmem:[%s1 + $0xd8] sm:$0xff]
        %v456 = vld [vmem:[%s1 + $0xe0] sm:$0xff]
        %v457 = vld [vmem:[%s1 + $0xe8] sm:$0xff]
        %v458 = vld [vmem:[%s1 + $0xf0] sm:$0xff]
        %v459 = vld [vmem:[%s1 + $0xf8] sm:$0xff]
        %v460 = vld [vmem:[%s1 + $0x100] sm:$0xff]
        %v461 = vld [vmem:[%s1 + $0x108] sm:$0xff]
        %v462 = vld [vmem:[%s1 + $0x110] sm:$0xff]
        %v463 = vld [vmem:[%s1 + $0x118] sm:$0xff]
        %v464 = vld [vmem:[%s1 + $0x120] sm:$0xff]
        %v465 = vld [vmem:[%s1 + $0x128] sm:$0xff]
        %v466 = vld [vmem:[%s1 + $0x130] sm:$0xff]
        %v467 = vld [vmem:[%s1 + $0x138] sm:$0xff]
        %vm468 = vcmask 523264
        %v470 = vsel %vm468, %v172, 0
        %v473 = vsel %vm468, %v173, 0
        %v476 = vsel %vm468, %v174, 0
        %v479 = vsel %vm468, %v175, 0
        %v482 = vsel %vm468, %v176, 0
        %v485 = vsel %vm468, %v177, 0
        %v488 = vsel %vm468, %v178, 0
        %v491 = vsel %vm468, %v179, 0
        %v494 = vsel %vm468, %v180, 0
        %v497 = vsel %vm468, %v181, 0
        %v500 = vsel %vm468, %v182, 0
        %v503 = vsel %vm468, %v183, 0
        %v506 = vsel %vm468, %v184, 0
        %v509 = vsel %vm468, %v185, 0
        %v512 = vsel %vm468, %v186, 0
        %v515 = vsel %vm468, %v187, 0
        %v518 = vsel %vm468, %v188, 0
        %v521 = vsel %vm468, %v189, 0
        %v524 = vsel %vm468, %v190, 0
        %v527 = vsel %vm468, %v191, 0
        %v530 = vsel %vm468, %v192, 0
        %v533 = vsel %vm468, %v193, 0
        %v536 = vsel %vm468, %v194, 0
        %v539 = vsel %vm468, %v195, 0
        %v542 = vsel %vm468, %v196, 0
        %v545 = vsel %vm468, %v197, 0
        %v548 = vsel %vm468, %v198, 0
        %v551 = vsel %vm468, %v199, 0
        %v554 = vsel %vm468, %v200, 0
        %v557 = vsel %vm468, %v201, 0
        %v560 = vsel %vm468, %v202, 0
        %v563 = vsel %vm468, %v203, 0
        %565 = vmatprep.subr.mxu0 %v429
        %566 = vmatpush1.msra.mxu0 %v428
        %567 = vmatprep.subr.mxu0 %v434
        %568 = vmatpush1.msra.mxu0 %v433
        %569 = vmatprep.subr.mxu0 %v439
        %570 = vmatpush1.msra.mxu0 %v438
        %571 = vmatprep.subr.mxu0 %v444
        %572 = vmatpush1.msra.mxu0 %v443
        %573 = vmatprep.subr.mxu0 %v449
        %574 = vmatpush1.msra.mxu0 %v448
        %575 = vmatprep.subr.mxu0 %v454
        %576 = vmatpush1.msra.mxu0 %v453
        %577 = vmatprep.subr.mxu0 %v459
        %578 = vmatpush1.msra.mxu0 %v458
        %579 = vmatprep.subr.mxu0 %v464
        %580 = vmatpush1.msra.mxu0 %v463
        %581 = vmatprep.subr.mxu0 0.0
        %582 = vmatpush1.msra.mxu0 0.0
        %583 = vmatprep.subr.mxu0 0.0
        %584 = vmatpush1.msra.mxu0 0.0
        %585 = vmatprep.subr.mxu0 0.0
        %586 = vmatpush1.msra.mxu0 0.0
        %587 = vmatprep.subr.mxu0 0.0
        %588 = vmatpush1.msra.mxu0 0.0
        %589 = vmatprep.subr.mxu0 0.0
        %590 = vmatpush1.msra.mxu0 0.0
        %591 = vmatprep.subr.mxu0 0.0
        %592 = vmatpush1.msra.mxu0 0.0
        %593 = vmatprep.subr.mxu0 0.0
        %594 = vmatpush1.msra.mxu0 0.0
        %595 = vmatprep.subr.mxu0 0.0
        %596 = vmatpush1.msra.mxu0 0.0
        %597 = vmatprep.subr.mxu0 0.0
        %598 = vmatpush1.msra.mxu0 0.0
        %599 = vmatprep.subr.mxu0 0.0
        %600 = vmatpush1.msra.mxu0 0.0
        %601 = vmatprep.subr.mxu0 0.0
        %602 = vmatpush1.msra.mxu0 0.0
        %603 = vmatprep.subr.mxu0 0.0
        %604 = vmatpush1.msra.mxu0 0.0
        %605 = vmatprep.subr.mxu0 0.0
        %606 = vmatpush1.msra.mxu0 0.0
        %607 = vmatprep.subr.mxu0 0.0
        %608 = vmatpush1.msra.mxu0 0.0
        %609 = vmatprep.subr.mxu0 0.0
        %610 = vmatpush1.msra.mxu0 0.0
        %611 = vmatprep.subr.mxu0 0.0
        %612 = vmatpush1.msra.mxu0 0.0
        %613 = vmatprep.subr.mxu0 0.0
        %614 = vmatpush1.msra.mxu0 0.0
        %615 = vmatprep.subr.mxu0 0.0
        %616 = vmatpush1.msra.mxu0 0.0
        %617 = vmatprep.subr.mxu0 0.0
        %618 = vmatpush1.msra.mxu0 0.0
        %619 = vmatprep.subr.mxu0 0.0
        %620 = vmatpush1.msra.mxu0 0.0
        %621 = vmatprep.subr.mxu0 0.0
        %622 = vmatpush1.msra.mxu0 0.0
        %623 = vmatprep.subr.mxu0 0.0
        %624 = vmatpush1.msra.mxu0 0.0
        %625 = vmatprep.subr.mxu0 0.0
        %626 = vmatpush1.msra.mxu0 0.0
        %627 = vmatprep.subr.mxu0 0.0
        %628 = vmatpush1.msra.mxu0 0.0
        %629 = vmatprep.mubr.f32.mxu0 0.0
        %630 = vmatmul.mubr.f32.gmra.mrb[0].mxu0 %v470
        %v631 = vpop.f32.mrb[0].mxu0
        %v632 = vadd.f32 0.0, %v631
        %v633 = vpop.f32.mrb[0].mxu0
        %v634 = vadd.f32 0.0, %v633
        %635 = vmatprep.mubr.f32.mxu0 0.0
        %636 = vmatmul.mubr.f32.gmra.mrb[0].mxu0 %v473
        %v637 = vpop.f32.mrb[0].mxu0
        %v638 = vadd.f32 0.0, %v637
        %v639 = vpop.f32.mrb[0].mxu0
        %v640 = vadd.f32 0.0, %v639
        %641 = vmatprep.mubr.f32.mxu0 0.0
        %642 = vmatmul.mubr.f32.gmra.mrb[0].mxu0 %v476
        %v643 = vpop.f32.mrb[0].mxu0
        %v644 = vadd.f32 0.0, %v643
        %v645 = vpop.f32.mrb[0].mxu0
        %v646 = vadd.f32 0.0, %v645
        %647 = vmatprep.mubr.f32.mxu0 0.0
        %648 = vmatmul.mubr.f32.gmra.mrb[0].mxu0 %v479
        %v649 = vpop.f32.mrb[0].mxu0
        %v650 = vadd.f32 0.0, %v649
        %v651 = vpop.f32.mrb[0].mxu0
        %v652 = vadd.f32 0.0, %v651
        %653 = vmatprep.mubr.f32.mxu0 0.0
        %654 = vmatmul.mubr.f32.gmra.mrb[0].mxu0 %v482
        %v655 = vpop.f32.mrb[0].mxu0
        %v656 = vadd.f32 0.0, %v655
        %v657 = vpop.f32.mrb[0].mxu0
        %v658 = vadd.f32 0.0, %v657
        %659 = vmatprep.mubr.f32.mxu0 0.0
        %660 = vmatmul.mubr.f32.gmra.mrb[0].mxu0 %v485
        %v661 = vpop.f32.mrb[0].mxu0
        %v662 = vadd.f32 0.0, %v661
        %v663 = vpop.f32.mrb[0].mxu0
        %v664 = vadd.f32 0.0, %v663
        %665 = vmatprep.mubr.f32.mxu0 0.0
        %666 = vmatmul.mubr.f32.gmra.mrb[0].mxu0 %v488
        %v667 = vpop.f32.mrb[0].mxu0
        %v668 = vadd.f32 0.0, %v667
        %v669 = vpop.f32.mrb[0].mxu0
        %v670 = vadd.f32 0.0, %v669
        %671 = vmatprep.mubr.f32.mxu0 0.0
        %672 = vmatmul.mubr.f32.gmra.mrb[0].mxu0 %v491
        %v673 = vpop.f32.mrb[0].mxu0
        %v674 = vadd.f32 0.0, %v673
        %v675 = vpop.f32.mrb[0].mxu0
        %v676 = vadd.f32 0.0, %v675
        %677 = vmatprep.mubr.f32.mxu0 0.0
        %678 = vmatmul.mubr.f32.gmra.mrb[0].mxu0 %v494
        %v679 = vpop.f32.mrb[0].mxu0
        %v680 = vadd.f32 0.0, %v679
        %v681 = vpop.f32.mrb[0].mxu0
        %v682 = vadd.f32 0.0, %v681
        %683 = vmatprep.mubr.f32.mxu0 0.0
        %684 = vmatmul.mubr.f32.gmra.mrb[0].mxu0 %v497
        %v685 = vpop.f32.mrb[0].mxu0
        %v686 = vadd.f32 0.0, %v685
        %v687 = vpop.f32.mrb[0].mxu0
        %v688 = vadd.f32 0.0, %v687
        %689 = vmatprep.mubr.f32.mxu0 0.0
        %690 = vmatmul.mubr.f32.gmra.mrb[0].mxu0 %v500
        %v691 = vpop.f32.mrb[0].mxu0
        %v692 = vadd.f32 0.0, %v691
        %v693 = vpop.f32.mrb[0].mxu0
        %v694 = vadd.f32 0.0, %v693
        %695 = vmatprep.mubr.f32.mxu0 0.0
        %696 = vmatmul.mubr.f32.gmra.mrb[0].mxu0 %v503
        %v697 = vpop.f32.mrb[0].mxu0
        %v698 = vadd.f32 0.0, %v697
        %v699 = vpop.f32.mrb[0].mxu0
        %v700 = vadd.f32 0.0, %v699
        %701 = vmatprep.mubr.f32.mxu0 0.0
        %702 = vmatmul.mubr.f32.gmra.mrb[0].mxu0 %v506
        %v703 = vpop.f32.mrb[0].mxu0
        %v704 = vadd.f32 0.0, %v703
        %v705 = vpop.f32.mrb[0].mxu0
        %v706 = vadd.f32 0.0, %v705
        %707 = vmatprep.mubr.f32.mxu0 0.0
        %708 = vmatmul.mubr.f32.gmra.mrb[0].mxu0 %v509
        %v709 = vpop.f32.mrb[0].mxu0
        %v710 = vadd.f32 0.0, %v709
        %v711 = vpop.f32.mrb[0].mxu0
        %v712 = vadd.f32 0.0, %v711
        %713 = vmatprep.mubr.f32.mxu0 0.0
        %714 = vmatmul.mubr.f32.gmra.mrb[0].mxu0 %v512
        %v715 = vpop.f32.mrb[0].mxu0
        %v716 = vadd.f32 0.0, %v715
        %v717 = vpop.f32.mrb[0].mxu0
        %v718 = vadd.f32 0.0, %v717
        %719 = vmatprep.mubr.f32.mxu0 0.0
        %720 = vmatmul.mubr.f32.gmra.mrb[0].mxu0 %v515
        %v721 = vpop.f32.mrb[0].mxu0
        %v722 = vadd.f32 0.0, %v721
        %v723 = vpop.f32.mrb[0].mxu0
        %v724 = vadd.f32 0.0, %v723
        %725 = vmatprep.mubr.f32.mxu0 0.0
        %726 = vmatmul.mubr.f32.gmra.mrb[0].mxu0 %v518
        %v727 = vpop.f32.mrb[0].mxu0
        %v728 = vadd.f32 0.0, %v727
        %v729 = vpop.f32.mrb[0].mxu0
        %v730 = vadd.f32 0.0, %v729
        %731 = vmatprep.mubr.f32.mxu0 0.0
        %732 = vmatmul.mubr.f32.gmra.mrb[0].mxu0 %v521
        %v733 = vpop.f32.mrb[0].mxu0
        %v734 = vadd.f32 0.0, %v733
        %v735 = vpop.f32.mrb[0].mxu0
        %v736 = vadd.f32 0.0, %v735
        %737 = vmatprep.mubr.f32.mxu0 0.0
        %738 = vmatmul.mubr.f32.gmra.mrb[0].mxu0 %v524
        %v739 = vpop.f32.mrb[0].mxu0
        %v740 = vadd.f32 0.0, %v739
        %v741 = vpop.f32.mrb[0].mxu0
        %v742 = vadd.f32 0.0, %v741
        %743 = vmatprep.mubr.f32.mxu0 0.0
        %744 = vmatmul.mubr.f32.gmra.mrb[0].mxu0 %v527
        %v745 = vpop.f32.mrb[0].mxu0
        %v746 = vadd.f32 0.0, %v745
        %v747 = vpop.f32.mrb[0].mxu0
        %v748 = vadd.f32 0.0, %v747
        %749 = vmatprep.mubr.f32.mxu0 0.0
        %750 = vmatmul.mubr.f32.gmra.mrb[0].mxu0 %v530
        %v751 = vpop.f32.mrb[0].mxu0
        %v752 = vadd.f32 0.0, %v751
        %v753 = vpop.f32.mrb[0].mxu0
        %v754 = vadd.f32 0.0, %v753
        %755 = vmatprep.mubr.f32.mxu0 0.0
        %756 = vmatmul.mubr.f32.gmra.mrb[0].mxu0 %v533
        %v757 = vpop.f32.mrb[0].mxu0
        %v758 = vadd.f32 0.0, %v757
        %v759 = vpop.f32.mrb[0].mxu0
        %v760 = vadd.f32 0.0, %v759
        %761 = vmatprep.mubr.f32.mxu0 0.0
        %762 = vmatmul.mubr.f32.gmra.mrb[0].mxu0 %v536
        %v763 = vpop.f32.mrb[0].mxu0
        %v764 = vadd.f32 0.0, %v763
        %v765 = vpop.f32.mrb[0].mxu0
        %v766 = vadd.f32 0.0, %v765
        %767 = vmatprep.mubr.f32.mxu0 0.0
        %768 = vmatmul.mubr.f32.gmra.mrb[0].mxu0 %v539
        %v769 = vpop.f32.mrb[0].mxu0
        %v770 = vadd.f32 0.0, %v769
        %v771 = vpop.f32.mrb[0].mxu0
        %v772 = vadd.f32 0.0, %v771
        %773 = vmatprep.mubr.f32.mxu0 0.0
        %774 = vmatmul.mubr.f32.gmra.mrb[0].mxu0 %v542
        %v775 = vpop.f32.mrb[0].mxu0
        %v776 = vadd.f32 0.0, %v775
        %v777 = vpop.f32.mrb[0].mxu0
        %v778 = vadd.f32 0.0, %v777
        %779 = vmatprep.mubr.f32.mxu0 0.0
        %780 = vmatmul.mubr.f32.gmra.mrb[0].mxu0 %v545
        %v781 = vpop.f32.mrb[0].mxu0
        %v782 = vadd.f32 0.0, %v781
        %v783 = vpop.f32.mrb[0].mxu0
        %v784 = vadd.f32 0.0, %v783
        %785 = vmatprep.mubr.f32.mxu0 0.0
        %786 = vmatmul.mubr.f32.gmra.mrb[0].mxu0 %v548
        %v787 = vpop.f32.mrb[0].mxu0
        %v788 = vadd.f32 0.0, %v787
        %v789 = vpop.f32.mrb[0].mxu0
        %v790 = vadd.f32 0.0, %v789
        %791 = vmatprep.mubr.f32.mxu0 0.0
        %792 = vmatmul.mubr.f32.gmra.mrb[0].mxu0 %v551
        %v793 = vpop.f32.mrb[0].mxu0
        %v794 = vadd.f32 0.0, %v793
        %v795 = vpop.f32.mrb[0].mxu0
        %v796 = vadd.f32 0.0, %v795
        %797 = vmatprep.mubr.f32.mxu0 0.0
        %798 = vmatmul.mubr.f32.gmra.mrb[0].mxu0 %v554
        %v799 = vpop.f32.mrb[0].mxu0
        %v800 = vadd.f32 0.0, %v799
        %v801 = vpop.f32.mrb[0].mxu0
        %v802 = vadd.f32 0.0, %v801
        %803 = vmatprep.mubr.f32.mxu0 0.0
        %804 = vmatmul.mubr.f32.gmra.mrb[0].mxu0 %v557
        %v805 = vpop.f32.mrb[0].mxu0
        %v806 = vadd.f32 0.0, %v805
        %v807 = vpop.f32.mrb[0].mxu0
        %v808 = vadd.f32 0.0, %v807
        %809 = vmatprep.mubr.f32.mxu0 0.0
        %810 = vmatmul.mubr.f32.gmra.mrb[0].mxu0 %v560
        %v811 = vpop.f32.mrb[0].mxu0
        %v812 = vadd.f32 0.0, %v811
        %v813 = vpop.f32.mrb[0].mxu0
        %v814 = vadd.f32 0.0, %v813
        %815 = vmatprep.mubr.f32.mxu0 0.0
        %816 = vmatmul.mubr.f32.gmra.mrb[0].mxu0 %v563
        %v817 = vpop.f32.mrb[0].mxu0
        %v818 = vadd.f32 0.0, %v817
        %v819 = vpop.f32.mrb[0].mxu0
        %v820 = vadd.f32 0.0, %v819
        %821 = vdwg.mxu0
        %822 = vmatprep.subr.mxu0 %v431
        %823 = vmatpush1.msra.mxu0 %v430
        %824 = vmatprep.subr.mxu0 %v436
        %825 = vmatpush1.msra.mxu0 %v435
        %826 = vmatprep.subr.mxu0 %v441
        %827 = vmatpush1.msra.mxu0 %v440
        %828 = vmatprep.subr.mxu0 %v446
        %829 = vmatpush1.msra.mxu0 %v445
        %830 = vmatprep.subr.mxu0 %v451
        %831 = vmatpush1.msra.mxu0 %v450
        %832 = vmatprep.subr.mxu0 %v456
        %833 = vmatpush1.msra.mxu0 %v455
        %834 = vmatprep.subr.mxu0 %v461
        %835 = vmatpush1.msra.mxu0 %v460
        %836 = vmatprep.subr.mxu0 %v466
        %837 = vmatpush1.msra.mxu0 %v465
        %838 = vmatprep.subr.mxu0 0.0
        %839 = vmatpush1.msra.mxu0 0.0
        %840 = vmatprep.subr.mxu0 0.0
        %841 = vmatpush1.msra.mxu0 0.0
        %842 = vmatprep.subr.mxu0 0.0
        %843 = vmatpush1.msra.mxu0 0.0
        %844 = vmatprep.subr.mxu0 0.0
        %845 = vmatpush1.msra.mxu0 0.0
        %846 = vmatprep.subr.mxu0 0.0
        %847 = vmatpush1.msra.mxu0 0.0
        %848 = vmatprep.subr.mxu0 0.0
        %849 = vmatpush1.msra.mxu0 0.0
        %850 = vmatprep.subr.mxu0 0.0
        %851 = vmatpush1.msra.mxu0 0.0
        %852 = vmatprep.subr.mxu0 0.0
        %853 = vmatpush1.msra.mxu0 0.0
        %854 = vmatprep.subr.mxu0 0.0
        %855 = vmatpush1.msra.mxu0 0.0
        %856 = vmatprep.subr.mxu0 0.0
        %857 = vmatpush1.msra.mxu0 0.0
        %858 = vmatprep.subr.mxu0 0.0
        %859 = vmatpush1.msra.mxu0 0.0
        %860 = vmatprep.subr.mxu0 0.0
        %861 = vmatpush1.msra.mxu0 0.0
        %862 = vmatprep.subr.mxu0 0.0
        %863 = vmatpush1.msra.mxu0 0.0
        %864 = vmatprep.subr.mxu0 0.0
        %865 = vmatpush1.msra.mxu0 0.0
        %866 = vmatprep.subr.mxu0 0.0
        %867 = vmatpush1.msra.mxu0 0.0
        %868 = vmatprep.subr.mxu0 0.0
        %869 = vmatpush1.msra.mxu0 0.0
        %870 = vmatprep.subr.mxu0 0.0
        %871 = vmatpush1.msra.mxu0 0.0
        %872 = vmatprep.subr.mxu0 0.0
        %873 = vmatpush1.msra.mxu0 0.0
        %874 = vmatprep.subr.mxu0 0.0
        %875 = vmatpush1.msra.mxu0 0.0
        %876 = vmatprep.subr.mxu0 0.0
        %877 = vmatpush1.msra.mxu0 0.0
        %878 = vmatprep.subr.mxu0 0.0
        %879 = vmatpush1.msra.mxu0 0.0
        %880 = vmatprep.subr.mxu0 0.0
        %881 = vmatpush1.msra.mxu0 0.0
        %882 = vmatprep.subr.mxu0 0.0
        %883 = vmatpush1.msra.mxu0 0.0
        %884 = vmatprep.subr.mxu0 0.0
        %885 = vmatpush1.msra.mxu0 0.0
        %886 = vmatprep.mubr.f32.mxu0 0.0
        %887 = vmatmul.mubr.f32.gmra.mrb[0].mxu0 %v470
        %v888 = vpop.f32.mrb[0].mxu0
        %v889 = vadd.f32 0.0, %v888
        %v890 = vpop.f32.mrb[0].mxu0
        %v891 = vadd.f32 0.0, %v890
        %892 = vmatprep.mubr.f32.mxu0 0.0
        %893 = vmatmul.mubr.f32.gmra.mrb[0].mxu0 %v473
        %v894 = vpop.f32.mrb[0].mxu0
        %v895 = vadd.f32 0.0, %v894
        %v896 = vpop.f32.mrb[0].mxu0
        %v897 = vadd.f32 0.0, %v896
        %898 = vmatprep.mubr.f32.mxu0 0.0
        %899 = vmatmul.mubr.f32.gmra.mrb[0].mxu0 %v476
        %v900 = vpop.f32.mrb[0].mxu0
        %v901 = vadd.f32 0.0, %v900
        %v902 = vpop.f32.mrb[0].mxu0
        %v903 = vadd.f32 0.0, %v902
        %904 = vmatprep.mubr.f32.mxu0 0.0
        %905 = vmatmul.mubr.f32.gmra.mrb[0].mxu0 %v479
        %v906 = vpop.f32.mrb[0].mxu0
        %v907 = vadd.f32 0.0, %v906
        %v908 = vpop.f32.mrb[0].mxu0
        %v909 = vadd.f32 0.0, %v908
        %910 = vmatprep.mubr.f32.mxu0 0.0
        %911 = vmatmul.mubr.f32.gmra.mrb[0].mxu0 %v482
        %v912 = vpop.f32.mrb[0].mxu0
        %v913 = vadd.f32 0.0, %v912
        %v914 = vpop.f32.mrb[0].mxu0
        %v915 = vadd.f32 0.0, %v914
        %916 = vmatprep.mubr.f32.mxu0 0.0
        %917 = vmatmul.mubr.f32.gmra.mrb[0].mxu0 %v485
        %v918 = vpop.f32.mrb[0].mxu0
        %v919 = vadd.f32 0.0, %v918
        %v920 = vpop.f32.mrb[0].mxu0
        %v921 = vadd.f32 0.0, %v920
        %922 = vmatprep.mubr.f32.mxu0 0.0
        %923 = vmatmul.mubr.f32.gmra.mrb[0].mxu0 %v488
        %v924 = vpop.f32.mrb[0].mxu0
        %v925 = vadd.f32 0.0, %v924
        %v926 = vpop.f32.mrb[0].mxu0
        %v927 = vadd.f32 0.0, %v926
        %928 = vmatprep.mubr.f32.mxu0 0.0
        %929 = vmatmul.mubr.f32.gmra.mrb[0].mxu0 %v491
        %v930 = vpop.f32.mrb[0].mxu0
        %v931 = vadd.f32 0.0, %v930
        %v932 = vpop.f32.mrb[0].mxu0
        %v933 = vadd.f32 0.0, %v932
        %934 = vmatprep.mubr.f32.mxu0 0.0
        %935 = vmatmul.mubr.f32.gmra.mrb[0].mxu0 %v494
        %v936 = vpop.f32.mrb[0].mxu0
        %v937 = vadd.f32 0.0, %v936
        %v938 = vpop.f32.mrb[0].mxu0
        %v939 = vadd.f32 0.0, %v938
        %940 = vmatprep.mubr.f32.mxu0 0.0
        %941 = vmatmul.mubr.f32.gmra.mrb[0].mxu0 %v497
        %v942 = vpop.f32.mrb[0].mxu0
        %v943 = vadd.f32 0.0, %v942
        %v944 = vpop.f32.mrb[0].mxu0
        %v945 = vadd.f32 0.0, %v944
        %946 = vmatprep.mubr.f32.mxu0 0.0
        %947 = vmatmul.mubr.f32.gmra.mrb[0].mxu0 %v500
        %v948 = vpop.f32.mrb[0].mxu0
        %v949 = vadd.f32 0.0, %v948
        %v950 = vpop.f32.mrb[0].mxu0
        %v951 = vadd.f32 0.0, %v950
        %952 = vmatprep.mubr.f32.mxu0 0.0
        %953 = vmatmul.mubr.f32.gmra.mrb[0].mxu0 %v503
        %v954 = vpop.f32.mrb[0].mxu0
        %v955 = vadd.f32 0.0, %v954
        %v956 = vpop.f32.mrb[0].mxu0
        %v957 = vadd.f32 0.0, %v956
        %958 = vmatprep.mubr.f32.mxu0 0.0
        %959 = vmatmul.mubr.f32.gmra.mrb[0].mxu0 %v506
        %v960 = vpop.f32.mrb[0].mxu0
        %v961 = vadd.f32 0.0, %v960
        %v962 = vpop.f32.mrb[0].mxu0
        %v963 = vadd.f32 0.0, %v962
        %964 = vmatprep.mubr.f32.mxu0 0.0
        %965 = vmatmul.mubr.f32.gmra.mrb[0].mxu0 %v509
        %v966 = vpop.f32.mrb[0].mxu0
        %v967 = vadd.f32 0.0, %v966
        %v968 = vpop.f32.mrb[0].mxu0
        %v969 = vadd.f32 0.0, %v968
        %970 = vmatprep.mubr.f32.mxu0 0.0
        %971 = vmatmul.mubr.f32.gmra.mrb[0].mxu0 %v512
        %v972 = vpop.f32.mrb[0].mxu0
        %v973 = vadd.f32 0.0, %v972
        %v974 = vpop.f32.mrb[0].mxu0
        %v975 = vadd.f32 0.0, %v974
        %976 = vmatprep.mubr.f32.mxu0 0.0
        %977 = vmatmul.mubr.f32.gmra.mrb[0].mxu0 %v515
        %v978 = vpop.f32.mrb[0].mxu0
        %v979 = vadd.f32 0.0, %v978
        %v980 = vpop.f32.mrb[0].mxu0
        %v981 = vadd.f32 0.0, %v980
        %982 = vmatprep.mubr.f32.mxu0 0.0
        %983 = vmatmul.mubr.f32.gmra.mrb[0].mxu0 %v518
        %v984 = vpop.f32.mrb[0].mxu0
        %v985 = vadd.f32 0.0, %v984
        %v986 = vpop.f32.mrb[0].mxu0
        %v987 = vadd.f32 0.0, %v986
        %988 = vmatprep.mubr.f32.mxu0 0.0
        %989 = vmatmul.mubr.f32.gmra.mrb[0].mxu0 %v521
        %v990 = vpop.f32.mrb[0].mxu0
        %v991 = vadd.f32 0.0, %v990
        %v992 = vpop.f32.mrb[0].mxu0
        %v993 = vadd.f32 0.0, %v992
        %994 = vmatprep.mubr.f32.mxu0 0.0
        %995 = vmatmul.mubr.f32.gmra.mrb[0].mxu0 %v524
        %v996 = vpop.f32.mrb[0].mxu0
        %v997 = vadd.f32 0.0, %v996
        %v998 = vpop.f32.mrb[0].mxu0
        %v999 = vadd.f32 0.0, %v998
        %1000 = vmatprep.mubr.f32.mxu0 0.0
        %1001 = vmatmul.mubr.f32.gmra.mrb[0].mxu0 %v527
        %v1002 = vpop.f32.mrb[0].mxu0
        %v1003 = vadd.f32 0.0, %v1002
        %v1004 = vpop.f32.mrb[0].mxu0
        %v1005 = vadd.f32 0.0, %v1004
        %1006 = vmatprep.mubr.f32.mxu0 0.0
        %1007 = vmatmul.mubr.f32.gmra.mrb[0].mxu0 %v530
        %v1008 = vpop.f32.mrb[0].mxu0
        %v1009 = vadd.f32 0.0, %v1008
        %v1010 = vpop.f32.mrb[0].mxu0
        %v1011 = vadd.f32 0.0, %v1010
        %1012 = vmatprep.mubr.f32.mxu0 0.0
        %1013 = vmatmul.mubr.f32.gmra.mrb[0].mxu0 %v533
        %v1014 = vpop.f32.mrb[0].mxu0
        %v1015 = vadd.f32 0.0, %v1014
        %v1016 = vpop.f32.mrb[0].mxu0
        %v1017 = vadd.f32 0.0, %v1016
        %1018 = vmatprep.mubr.f32.mxu0 0.0
        %1019 = vmatmul.mubr.f32.gmra.mrb[0].mxu0 %v536
        %v1020 = vpop.f32.mrb[0].mxu0
        %v1021 = vadd.f32 0.0, %v1020
        %v1022 = vpop.f32.mrb[0].mxu0
        %v1023 = vadd.f32 0.0, %v1022
        %1024 = vmatprep.mubr.f32.mxu0 0.0
        %1025 = vmatmul.mubr.f32.gmra.mrb[0].mxu0 %v539
        %v1026 = vpop.f32.mrb[0].mxu0
        %v1027 = vadd.f32 0.0, %v1026
        %v1028 = vpop.f32.mrb[0].mxu0
        %v1029 = vadd.f32 0.0, %v1028
        %1030 = vmatprep.mubr.f32.mxu0 0.0
        %1031 = vmatmul.mubr.f32.gmra.mrb[0].mxu0 %v542
        %v1032 = vpop.f32.mrb[0].mxu0
        %v1033 = vadd.f32 0.0, %v1032
        %v1034 = vpop.f32.mrb[0].mxu0
        %v1035 = vadd.f32 0.0, %v1034
        %1036 = vmatprep.mubr.f32.mxu0 0.0
        %1037 = vmatmul.mubr.f32.gmra.mrb[0].mxu0 %v545
        %v1038 = vpop.f32.mrb[0].mxu0
        %v1039 = vadd.f32 0.0, %v1038
        %v1040 = vpop.f32.mrb[0].mxu0
        %v1041 = vadd.f32 0.0, %v1040
        %1042 = vmatprep.mubr.f32.mxu0 0.0
        %1043 = vmatmul.mubr.f32.gmra.mrb[0].mxu0 %v548
        %v1044 = vpop.f32.mrb[0].mxu0
        %v1045 = vadd.f32 0.0, %v1044
        %v1046 = vpop.f32.mrb[0].mxu0
        %v1047 = vadd.f32 0.0, %v1046
        %1048 = vmatprep.mubr.f32.mxu0 0.0
        %1049 = vmatmul.mubr.f32.gmra.mrb[0].mxu0 %v551
        %v1050 = vpop.f32.mrb[0].mxu0
        %v1051 = vadd.f32 0.0, %v1050
        %v1052 = vpop.f32.mrb[0].mxu0
        %v1053 = vadd.f32 0.0, %v1052
        %1054 = vmatprep.mubr.f32.mxu0 0.0
        %1055 = vmatmul.mubr.f32.gmra.mrb[0].mxu0 %v554
        %v1056 = vpop.f32.mrb[0].mxu0
        %v1057 = vadd.f32 0.0, %v1056
        %v1058 = vpop.f32.mrb[0].mxu0
        %v1059 = vadd.f32 0.0, %v1058
        %1060 = vmatprep.mubr.f32.mxu0 0.0
        %1061 = vmatmul.mubr.f32.gmra.mrb[0].mxu0 %v557
        %v1062 = vpop.f32.mrb[0].mxu0
        %v1063 = vadd.f32 0.0, %v1062
        %v1064 = vpop.f32.mrb[0].mxu0
        %v1065 = vadd.f32 0.0, %v1064
        %1066 = vmatprep.mubr.f32.mxu0 0.0
        %1067 = vmatmul.mubr.f32.gmra.mrb[0].mxu0 %v560
        %v1068 = vpop.f32.mrb[0].mxu0
        %v1069 = vadd.f32 0.0, %v1068
        %v1070 = vpop.f32.mrb[0].mxu0
        %v1071 = vadd.f32 0.0, %v1070
        %1072 = vmatprep.mubr.f32.mxu0 0.0
        %1073 = vmatmul.mubr.f32.gmra.mrb[0].mxu0 %v563
        %v1074 = vpop.f32.mrb[0].mxu0
        %v1075 = vadd.f32 0.0, %v1074
        %v1076 = vpop.f32.mrb[0].mxu0
        %v1077 = vadd.f32 0.0, %v1076
        %1078 = vdwg.mxu0
        %1079 = vmatprep.subr.mxu0 0.0
        %1080 = vmatpush1.msra.mxu0 %v432
        %1081 = vmatprep.subr.mxu0 0.0
        %1082 = vmatpush1.msra.mxu0 %v437
        %1083 = vmatprep.subr.mxu0 0.0
        %1084 = vmatpush1.msra.mxu0 %v442
        %1085 = vmatprep.subr.mxu0 0.0
        %1086 = vmatpush1.msra.mxu0 %v447
        %1087 = vmatprep.subr.mxu0 0.0
        %1088 = vmatpush1.msra.mxu0 %v452
        %1089 = vmatprep.subr.mxu0 0.0
        %1090 = vmatpush1.msra.mxu0 %v457
        %1091 = vmatprep.subr.mxu0 0.0
        %1092 = vmatpush1.msra.mxu0 %v462
        %1093 = vmatprep.subr.mxu0 0.0
        %1094 = vmatpush1.msra.mxu0 %v467
        %1095 = vmatprep.subr.mxu0 0.0
        %1096 = vmatpush1.msra.mxu0 0.0
        %1097 = vmatprep.subr.mxu0 0.0
        %1098 = vmatpush1.msra.mxu0 0.0
        %1099 = vmatprep.subr.mxu0 0.0
        %1100 = vmatpush1.msra.mxu0 0.0
        %1101 = vmatprep.subr.mxu0 0.0
        %1102 = vmatpush1.msra.mxu0 0.0
        %1103 = vmatprep.subr.mxu0 0.0
        %1104 = vmatpush1.msra.mxu0 0.0
        %1105 = vmatprep.subr.mxu0 0.0
        %1106 = vmatpush1.msra.mxu0 0.0
        %1107 = vmatprep.subr.mxu0 0.0
        %1108 = vmatpush1.msra.mxu0 0.0
        %1109 = vmatprep.subr.mxu0 0.0
        %1110 = vmatpush1.msra.mxu0 0.0
        %1111 = vmatprep.subr.mxu0 0.0
        %1112 = vmatpush1.msra.mxu0 0.0
        %1113 = vmatprep.subr.mxu0 0.0
        %1114 = vmatpush1.msra.mxu0 0.0
        %1115 = vmatprep.subr.mxu0 0.0
        %1116 = vmatpush1.msra.mxu0 0.0
        %1117 = vmatprep.subr.mxu0 0.0
        %1118 = vmatpush1.msra.mxu0 0.0
        %1119 = vmatprep.subr.mxu0 0.0
        %1120 = vmatpush1.msra.mxu0 0.0
        %1121 = vmatprep.subr.mxu0 0.0
        %1122 = vmatpush1.msra.mxu0 0.0
        %1123 = vmatprep.subr.mxu0 0.0
        %1124 = vmatpush1.msra.mxu0 0.0
        %1125 = vmatprep.subr.mxu0 0.0
        %1126 = vmatpush1.msra.mxu0 0.0
        %1127 = vmatprep.subr.mxu0 0.0
        %1128 = vmatpush1.msra.mxu0 0.0
        %1129 = vmatprep.subr.mxu0 0.0
        %1130 = vmatpush1.msra.mxu0 0.0
        %1131 = vmatprep.subr.mxu0 0.0
        %1132 = vmatpush1.msra.mxu0 0.0
        %1133 = vmatprep.subr.mxu0 0.0
        %1134 = vmatpush1.msra.mxu0 0.0
        %1135 = vmatprep.subr.mxu0 0.0
        %1136 = vmatpush1.msra.mxu0 0.0
        %1137 = vmatprep.subr.mxu0 0.0
        %1138 = vmatpush1.msra.mxu0 0.0
        %1139 = vmatprep.subr.mxu0 0.0
        %1140 = vmatpush1.msra.mxu0 0.0
        %1141 = vmatprep.subr.mxu0 0.0
        %1142 = vmatpush1.msra.mxu0 0.0
        %1143 = vmatprep.mubr.f32.mxu0 0.0
        %1144 = vmatmul.mubr.f32.gmra.mrb[0].mxu0 %v470
        %v1145 = vpop.f32.mrb[0].mxu0
        %v1146 = vadd.f32 0.0, %v1145
        %v1147 = vpop.f32.mrb[0].mxu0
        %1148 = vmatprep.mubr.f32.mxu0 0.0
        %1149 = vmatmul.mubr.f32.gmra.mrb[0].mxu0 %v473
        %v1150 = vpop.f32.mrb[0].mxu0
        %v1151 = vadd.f32 0.0, %v1150
        %v1152 = vpop.f32.mrb[0].mxu0
        %1153 = vmatprep.mubr.f32.mxu0 0.0
        %1154 = vmatmul.mubr.f32.gmra.mrb[0].mxu0 %v476
        %v1155 = vpop.f32.mrb[0].mxu0
        %v1156 = vadd.f32 0.0, %v1155
        %v1157 = vpop.f32.mrb[0].mxu0
        %1158 = vmatprep.mubr.f32.mxu0 0.0
        %1159 = vmatmul.mubr.f32.gmra.mrb[0].mxu0 %v479
        %v1160 = vpop.f32.mrb[0].mxu0
        %v1161 = vadd.f32 0.0, %v1160
        %v1162 = vpop.f32.mrb[0].mxu0
        %1163 = vmatprep.mubr.f32.mxu0 0.0
        %1164 = vmatmul.mubr.f32.gmra.mrb[0].mxu0 %v482
        %v1165 = vpop.f32.mrb[0].mxu0
        %v1166 = vadd.f32 0.0, %v1165
        %v1167 = vpop.f32.mrb[0].mxu0
        %1168 = vmatprep.mubr.f32.mxu0 0.0
        %1169 = vmatmul.mubr.f32.gmra.mrb[0].mxu0 %v485
        %v1170 = vpop.f32.mrb[0].mxu0
        %v1171 = vadd.f32 0.0, %v1170
        %v1172 = vpop.f32.mrb[0].mxu0
        %1173 = vmatprep.mubr.f32.mxu0 0.0
        %1174 = vmatmul.mubr.f32.gmra.mrb[0].mxu0 %v488
        %v1175 = vpop.f32.mrb[0].mxu0
        %v1176 = vadd.f32 0.0, %v1175
        %v1177 = vpop.f32.mrb[0].mxu0
        %1178 = vmatprep.mubr.f32.mxu0 0.0
        %1179 = vmatmul.mubr.f32.gmra.mrb[0].mxu0 %v491
        %v1180 = vpop.f32.mrb[0].mxu0
        %v1181 = vadd.f32 0.0, %v1180
        %v1182 = vpop.f32.mrb[0].mxu0
        %1183 = vmatprep.mubr.f32.mxu0 0.0
        %1184 = vmatmul.mubr.f32.gmra.mrb[0].mxu0 %v494
        %v1185 = vpop.f32.mrb[0].mxu0
        %v1186 = vadd.f32 0.0, %v1185
        %v1187 = vpop.f32.mrb[0].mxu0
        %1188 = vmatprep.mubr.f32.mxu0 0.0
        %1189 = vmatmul.mubr.f32.gmra.mrb[0].mxu0 %v497
        %v1190 = vpop.f32.mrb[0].mxu0
        %v1191 = vadd.f32 0.0, %v1190
        %v1192 = vpop.f32.mrb[0].mxu0
        %1193 = vmatprep.mubr.f32.mxu0 0.0
        %1194 = vmatmul.mubr.f32.gmra.mrb[0].mxu0 %v500
        %v1195 = vpop.f32.mrb[0].mxu0
        %v1196 = vadd.f32 0.0, %v1195
        %v1197 = vpop.f32.mrb[0].mxu0
        %1198 = vmatprep.mubr.f32.mxu0 0.0
        %1199 = vmatmul.mubr.f32.gmra.mrb[0].mxu0 %v503
        %v1200 = vpop.f32.mrb[0].mxu0
        %v1201 = vadd.f32 0.0, %v1200
        %v1202 = vpop.f32.mrb[0].mxu0
        %1203 = vmatprep.mubr.f32.mxu0 0.0
        %1204 = vmatmul.mubr.f32.gmra.mrb[0].mxu0 %v506
        %v1205 = vpop.f32.mrb[0].mxu0
        %v1206 = vadd.f32 0.0, %v1205
        %v1207 = vpop.f32.mrb[0].mxu0
        %1208 = vmatprep.mubr.f32.mxu0 0.0
        %1209 = vmatmul.mubr.f32.gmra.mrb[0].mxu0 %v509
        %v1210 = vpop.f32.mrb[0].mxu0
        %v1211 = vadd.f32 0.0, %v1210
        %v1212 = vpop.f32.mrb[0].mxu0
        %1213 = vmatprep.mubr.f32.mxu0 0.0
        %1214 = vmatmul.mubr.f32.gmra.mrb[0].mxu0 %v512
        %v1215 = vpop.f32.mrb[0].mxu0
        %v1216 = vadd.f32 0.0, %v1215
        %v1217 = vpop.f32.mrb[0].mxu0
        %1218 = vmatprep.mubr.f32.mxu0 0.0
        %1219 = vmatmul.mubr.f32.gmra.mrb[0].mxu0 %v515
        %v1220 = vpop.f32.mrb[0].mxu0
        %v1221 = vadd.f32 0.0, %v1220
        %v1222 = vpop.f32.mrb[0].mxu0
        %1223 = vmatprep.mubr.f32.mxu0 0.0
        %1224 = vmatmul.mubr.f32.gmra.mrb[0].mxu0 %v518
        %v1225 = vpop.f32.mrb[0].mxu0
        %v1226 = vadd.f32 0.0, %v1225
        %v1227 = vpop.f32.mrb[0].mxu0
        %1228 = vmatprep.mubr.f32.mxu0 0.0
        %1229 = vmatmul.mubr.f32.gmra.mrb[0].mxu0 %v521
        %v1230 = vpop.f32.mrb[0].mxu0
        %v1231 = vadd.f32 0.0, %v1230
        %v1232 = vpop.f32.mrb[0].mxu0
        %1233 = vmatprep.mubr.f32.mxu0 0.0
        %1234 = vmatmul.mubr.f32.gmra.mrb[0].mxu0 %v524
        %v1235 = vpop.f32.mrb[0].mxu0
        %v1236 = vadd.f32 0.0, %v1235
        %v1237 = vpop.f32.mrb[0].mxu0
        %1238 = vmatprep.mubr.f32.mxu0 0.0
        %1239 = vmatmul.mubr.f32.gmra.mrb[0].mxu0 %v527
        %v1240 = vpop.f32.mrb[0].mxu0
        %v1241 = vadd.f32 0.0, %v1240
        %v1242 = vpop.f32.mrb[0].mxu0
        %1243 = vmatprep.mubr.f32.mxu0 0.0
        %1244 = vmatmul.mubr.f32.gmra.mrb[0].mxu0 %v530
        %v1245 = vpop.f32.mrb[0].mxu0
        %v1246 = vadd.f32 0.0, %v1245
        %v1247 = vpop.f32.mrb[0].mxu0
        %1248 = vmatprep.mubr.f32.mxu0 0.0
        %1249 = vmatmul.mubr.f32.gmra.mrb[0].mxu0 %v533
        %v1250 = vpop.f32.mrb[0].mxu0
        %v1251 = vadd.f32 0.0, %v1250
        %v1252 = vpop.f32.mrb[0].mxu0
        %1253 = vmatprep.mubr.f32.mxu0 0.0
        %1254 = vmatmul.mubr.f32.gmra.mrb[0].mxu0 %v536
        %v1255 = vpop.f32.mrb[0].mxu0
        %v1256 = vadd.f32 0.0, %v1255
        %v1257 = vpop.f32.mrb[0].mxu0
        %1258 = vmatprep.mubr.f32.mxu0 0.0
        %1259 = vmatmul.mubr.f32.gmra.mrb[0].mxu0 %v539
        %v1260 = vpop.f32.mrb[0].mxu0
        %v1261 = vadd.f32 0.0, %v1260
        %v1262 = vpop.f32.mrb[0].mxu0
        %1263 = vmatprep.mubr.f32.mxu0 0.0
        %1264 = vmatmul.mubr.f32.gmra.mrb[0].mxu0 %v542
        %v1265 = vpop.f32.mrb[0].mxu0
        %v1266 = vadd.f32 0.0, %v1265
        %v1267 = vpop.f32.mrb[0].mxu0
        %1268 = vmatprep.mubr.f32.mxu0 0.0
        %1269 = vmatmul.mubr.f32.gmra.mrb[0].mxu0 %v545
        %v1270 = vpop.f32.mrb[0].mxu0
        %v1271 = vadd.f32 0.0, %v1270
        %v1272 = vpop.f32.mrb[0].mxu0
        %1273 = vmatprep.mubr.f32.mxu0 0.0
        %1274 = vmatmul.mubr.f32.gmra.mrb[0].mxu0 %v548
        %v1275 = vpop.f32.mrb[0].mxu0
        %v1276 = vadd.f32 0.0, %v1275
        %v1277 = vpop.f32.mrb[0].mxu0
        %1278 = vmatprep.mubr.f32.mxu0 0.0
        %1279 = vmatmul.mubr.f32.gmra.mrb[0].mxu0 %v551
        %v1280 = vpop.f32.mrb[0].mxu0
        %v1281 = vadd.f32 0.0, %v1280
        %v1282 = vpop.f32.mrb[0].mxu0
        %1283 = vmatprep.mubr.f32.mxu0 0.0
        %1284 = vmatmul.mubr.f32.gmra.mrb[0].mxu0 %v554
        %v1285 = vpop.f32.mrb[0].mxu0
        %v1286 = vadd.f32 0.0, %v1285
        %v1287 = vpop.f32.mrb[0].mxu0
        %1288 = vmatprep.mubr.f32.mxu0 0.0
        %1289 = vmatmul.mubr.f32.gmra.mrb[0].mxu0 %v557
        %v1290 = vpop.f32.mrb[0].mxu0
        %v1291 = vadd.f32 0.0, %v1290
        %v1292 = vpop.f32.mrb[0].mxu0
        %1293 = vmatprep.mubr.f32.mxu0 0.0
        %1294 = vmatmul.mubr.f32.gmra.mrb[0].mxu0 %v560
        %v1295 = vpop.f32.mrb[0].mxu0
        %v1296 = vadd.f32 0.0, %v1295
        %v1297 = vpop.f32.mrb[0].mxu0
        %1298 = vmatprep.mubr.f32.mxu0 0.0
        %1299 = vmatmul.mubr.f32.gmra.mrb[0].mxu0 %v563
        %v1300 = vpop.f32.mrb[0].mxu0
        %v1301 = vadd.f32 0.0, %v1300
        %v1302 = vpop.f32.mrb[0].mxu0
        %1303 = vdwg.mxu0
        %v1304 = vld [vmem:[%s2] sm:$0x1]
        %v1305 = vlaneseq
        %v1306 = vshrl.u32 %v1305, 7
        %v1307 = vsub.s32 0, %v1306
        %v1308 = vrot.slane %v1304, %v1307
        %v1309 = vadd.f32 %v632, %v1308
        %v1310 = vadd.f32 %v638, %v1308
        %v1311 = vadd.f32 %v644, %v1308
        %v1312 = vadd.f32 %v650, %v1308
        %v1313 = vadd.f32 %v656, %v1308
        %v1314 = vadd.f32 %v662, %v1308
        %v1315 = vadd.f32 %v668, %v1308
        %v1316 = vadd.f32 %v674, %v1308
        %v1317 = vadd.f32 %v680, %v1308
        %v1318 = vadd.f32 %v686, %v1308
        %v1319 = vadd.f32 %v692, %v1308
        %v1320 = vadd.f32 %v698, %v1308
        %v1321 = vadd.f32 %v704, %v1308
        %v1322 = vadd.f32 %v710, %v1308
        %v1323 = vadd.f32 %v716, %v1308
        %v1324 = vadd.f32 %v722, %v1308
        %v1325 = vadd.f32 %v728, %v1308
        %v1326 = vadd.f32 %v734, %v1308
        %v1327 = vadd.f32 %v740, %v1308
        %v1328 = vadd.f32 %v746, %v1308
        %v1329 = vadd.f32 %v752, %v1308
        %v1330 = vadd.f32 %v758, %v1308
        %v1331 = vadd.f32 %v764, %v1308
        %v1332 = vadd.f32 %v770, %v1308
        %v1333 = vadd.f32 %v776, %v1308
        %v1334 = vadd.f32 %v782, %v1308
        %v1335 = vadd.f32 %v788, %v1308
        %v1336 = vadd.f32 %v794, %v1308
        %v1337 = vadd.f32 %v800, %v1308
        %v1338 = vadd.f32 %v806, %v1308
        %v1339 = vadd.f32 %v812, %v1308
        %v1340 = vadd.f32 %v818, %v1308
        %v1341 = vadd.f32 %v1309, 0.0
        %v1342 = vadd.f32 %v1310, 0.0
        %v1343 = vadd.f32 %v1311, 0.0
        %v1344 = vadd.f32 %v1312, 0.0
        %v1345 = vadd.f32 %v1313, 0.0
        %v1346 = vadd.f32 %v1314, 0.0
        %v1347 = vadd.f32 %v1315, 0.0
        %v1348 = vadd.f32 %v1316, 0.0
        %v1349 = vadd.f32 %v1317, 0.0
        %v1350 = vadd.f32 %v1318, 0.0
        %v1351 = vadd.f32 %v1319, 0.0
        %v1352 = vadd.f32 %v1320, 0.0
        %v1353 = vadd.f32 %v1321, 0.0
        %v1354 = vadd.f32 %v1322, 0.0
        %v1355 = vadd.f32 %v1323, 0.0
        %v1356 = vadd.f32 %v1324, 0.0
        %v1357 = vadd.f32 %v1325, 0.0
        %v1358 = vadd.f32 %v1326, 0.0
        %v1359 = vadd.f32 %v1327, 0.0
        %v1360 = vadd.f32 %v1328, 0.0
        %v1361 = vadd.f32 %v1329, 0.0
        %v1362 = vadd.f32 %v1330, 0.0
        %v1363 = vadd.f32 %v1331, 0.0
        %v1364 = vadd.f32 %v1332, 0.0
        %v1365 = vadd.f32 %v1333, 0.0
        %v1366 = vadd.f32 %v1334, 0.0
        %v1367 = vadd.f32 %v1335, 0.0
        %v1368 = vadd.f32 %v1336, 0.0
        %v1369 = vadd.f32 %v1337, 0.0
        %v1370 = vadd.f32 %v1338, 0.0
        %v1371 = vadd.f32 %v1339, 0.0
        %v1372 = vadd.f32 %v1340, 0.0
        %v1373 = vld [vmem:[%s2 + $0x1] sm:$0x1]
        %v1374 = vlaneseq
        %v1375 = vshrl.u32 %v1374, 7
        %v1376 = vsub.s32 0, %v1375
        %v1377 = vrot.slane %v1373, %v1376
        %v1378 = vadd.f32 %v634, %v1377
        %v1379 = vadd.f32 %v640, %v1377
        %v1380 = vadd.f32 %v646, %v1377
        %v1381 = vadd.f32 %v652, %v1377
        %v1382 = vadd.f32 %v658, %v1377
        %v1383 = vadd.f32 %v664, %v1377
        %v1384 = vadd.f32 %v670, %v1377
        %v1385 = vadd.f32 %v676, %v1377
        %v1386 = vadd.f32 %v682, %v1377
        %v1387 = vadd.f32 %v688, %v1377
        %v1388 = vadd.f32 %v694, %v1377
        %v1389 = vadd.f32 %v700, %v1377
        %v1390 = vadd.f32 %v706, %v1377
        %v1391 = vadd.f32 %v712, %v1377
        %v1392 = vadd.f32 %v718, %v1377
        %v1393 = vadd.f32 %v724, %v1377
        %v1394 = vadd.f32 %v730, %v1377
        %v1395 = vadd.f32 %v736, %v1377
        %v1396 = vadd.f32 %v742, %v1377
        %v1397 = vadd.f32 %v748, %v1377
        %v1398 = vadd.f32 %v754, %v1377
        %v1399 = vadd.f32 %v760, %v1377
        %v1400 = vadd.f32 %v766, %v1377
        %v1401 = vadd.f32 %v772, %v1377
        %v1402 = vadd.f32 %v778, %v1377
        %v1403 = vadd.f32 %v784, %v1377
        %v1404 = vadd.f32 %v790, %v1377
        %v1405 = vadd.f32 %v796, %v1377
        %v1406 = vadd.f32 %v802, %v1377
        %v1407 = vadd.f32 %v808, %v1377
        %v1408 = vadd.f32 %v814, %v1377
        %v1409 = vadd.f32 %v820, %v1377
        %1410 = vset.pattern.permute.xlu0 0
        %1411 = vperm.xlu0 %1410, %v172
        %v1412 = vpop.permute.xlu0 %1411
        %1414 = vset.pattern.permute.xlu0 0
        %1415 = vperm.xlu0 %1414, %v173
        %v1416 = vpop.permute.xlu0 %1415
        %1418 = vset.pattern.permute.xlu0 0
        %1419 = vperm.xlu0 %1418, %v174
        %v1420 = vpop.permute.xlu0 %1419
        %1422 = vset.pattern.permute.xlu0 0
        %1423 = vperm.xlu0 %1422, %v175
        %v1424 = vpop.permute.xlu0 %1423
        %1426 = vset.pattern.permute.xlu0 0
        %1427 = vperm.xlu0 %1426, %v176
        %v1428 = vpop.permute.xlu0 %1427
        %1430 = vset.pattern.permute.xlu0 0
        %1431 = vperm.xlu0 %1430, %v177
        %v1432 = vpop.permute.xlu0 %1431
        %1434 = vset.pattern.permute.xlu0 0
        %1435 = vperm.xlu0 %1434, %v178
        %v1436 = vpop.permute.xlu0 %1435
        %1438 = vset.pattern.permute.xlu0 0
        %1439 = vperm.xlu0 %1438, %v179
        %v1440 = vpop.permute.xlu0 %1439
        %1442 = vset.pattern.permute.xlu0 0
        %1443 = vperm.xlu0 %1442, %v180
        %v1444 = vpop.permute.xlu0 %1443
        %1446 = vset.pattern.permute.xlu0 0
        %1447 = vperm.xlu0 %1446, %v181
        %v1448 = vpop.permute.xlu0 %1447
        %1450 = vset.pattern.permute.xlu0 0
        %1451 = vperm.xlu0 %1450, %v182
        %v1452 = vpop.permute.xlu0 %1451
        %1454 = vset.pattern.permute.xlu0 0
        %1455 = vperm.xlu0 %1454, %v183
        %v1456 = vpop.permute.xlu0 %1455
        %1458 = vset.pattern.permute.xlu0 0
        %1459 = vperm.xlu0 %1458, %v184
        %v1460 = vpop.permute.xlu0 %1459
        %1462 = vset.pattern.permute.xlu0 0
        %1463 = vperm.xlu0 %1462, %v185
        %v1464 = vpop.permute.xlu0 %1463
        %1466 = vset.pattern.permute.xlu0 0
        %1467 = vperm.xlu0 %1466, %v186
        %v1468 = vpop.permute.xlu0 %1467
        %1470 = vset.pattern.permute.xlu0 0
        %1471 = vperm.xlu0 %1470, %v187
        %v1472 = vpop.permute.xlu0 %1471
        %1474 = vset.pattern.permute.xlu0 0
        %1475 = vperm.xlu0 %1474, %v188
        %v1476 = vpop.permute.xlu0 %1475
        %1478 = vset.pattern.permute.xlu0 0
        %1479 = vperm.xlu0 %1478, %v189
        %v1480 = vpop.permute.xlu0 %1479
        %1482 = vset.pattern.permute.xlu0 0
        %1483 = vperm.xlu0 %1482, %v190
        %v1484 = vpop.permute.xlu0 %1483
        %1486 = vset.pattern.permute.xlu0 0
        %1487 = vperm.xlu0 %1486, %v191
        %v1488 = vpop.permute.xlu0 %1487
        %1490 = vset.pattern.permute.xlu0 0
        %1491 = vperm.xlu0 %1490, %v192
        %v1492 = vpop.permute.xlu0 %1491
        %1494 = vset.pattern.permute.xlu0 0
        %1495 = vperm.xlu0 %1494, %v193
        %v1496 = vpop.permute.xlu0 %1495
        %1498 = vset.pattern.permute.xlu0 0
        %1499 = vperm.xlu0 %1498, %v194
        %v1500 = vpop.permute.xlu0 %1499
        %1502 = vset.pattern.permute.xlu0 0
        %1503 = vperm.xlu0 %1502, %v195
        %v1504 = vpop.permute.xlu0 %1503
        %1506 = vset.pattern.permute.xlu0 0
        %1507 = vperm.xlu0 %1506, %v196
        %v1508 = vpop.permute.xlu0 %1507
        %1510 = vset.pattern.permute.xlu0 0
        %1511 = vperm.xlu0 %1510, %v197
        %v1512 = vpop.permute.xlu0 %1511
        %1514 = vset.pattern.permute.xlu0 0
        %1515 = vperm.xlu0 %1514, %v198
        %v1516 = vpop.permute.xlu0 %1515
        %1518 = vset.pattern.permute.xlu0 0
        %1519 = vperm.xlu0 %1518, %v199
        %v1520 = vpop.permute.xlu0 %1519
        %1522 = vset.pattern.permute.xlu0 0
        %1523 = vperm.xlu0 %1522, %v200
        %v1524 = vpop.permute.xlu0 %1523
        %1526 = vset.pattern.permute.xlu0 0
        %1527 = vperm.xlu0 %1526, %v201
        %v1528 = vpop.permute.xlu0 %1527
        %1530 = vset.pattern.permute.xlu0 0
        %1531 = vperm.xlu0 %1530, %v202
        %v1532 = vpop.permute.xlu0 %1531
        %1534 = vset.pattern.permute.xlu0 0
        %1535 = vperm.xlu0 %1534, %v203
        %v1536 = vpop.permute.xlu0 %1535
        %v1538 = vmul.f32 %v1412, %v1378
        %v1539 = vmul.f32 %v1416, %v1379
        %v1540 = vmul.f32 %v1420, %v1380
        %v1541 = vmul.f32 %v1424, %v1381
        %v1542 = vmul.f32 %v1428, %v1382
        %v1543 = vmul.f32 %v1432, %v1383
        %v1544 = vmul.f32 %v1436, %v1384
        %v1545 = vmul.f32 %v1440, %v1385
        %v1546 = vmul.f32 %v1444, %v1386
        %v1547 = vmul.f32 %v1448, %v1387
        %v1548 = vmul.f32 %v1452, %v1388
        %v1549 = vmul.f32 %v1456, %v1389
        %v1550 = vmul.f32 %v1460, %v1390
        %v1551 = vmul.f32 %v1464, %v1391
        %v1552 = vmul.f32 %v1468, %v1392
        %v1553 = vmul.f32 %v1472, %v1393
        %v1554 = vmul.f32 %v1476, %v1394
        %v1555 = vmul.f32 %v1480, %v1395
        %v1556 = vmul.f32 %v1484, %v1396
        %v1557 = vmul.f32 %v1488, %v1397
        %v1558 = vmul.f32 %v1492, %v1398
        %v1559 = vmul.f32 %v1496, %v1399
        %v1560 = vmul.f32 %v1500, %v1400
        %v1561 = vmul.f32 %v1504, %v1401
        %v1562 = vmul.f32 %v1508, %v1402
        %v1563 = vmul.f32 %v1512, %v1403
        %v1564 = vmul.f32 %v1516, %v1404
        %v1565 = vmul.f32 %v1520, %v1405
        %v1566 = vmul.f32 %v1524, %v1406
        %v1567 = vmul.f32 %v1528, %v1407
        %v1568 = vmul.f32 %v1532, %v1408
        %v1569 = vmul.f32 %v1536, %v1409
        %v1570 = vadd.f32 %v1341, %v1538
        %v1571 = vadd.f32 %v1342, %v1539
        %v1572 = vadd.f32 %v1343, %v1540
        %v1573 = vadd.f32 %v1344, %v1541
        %v1574 = vadd.f32 %v1345, %v1542
        %v1575 = vadd.f32 %v1346, %v1543
        %v1576 = vadd.f32 %v1347, %v1544
        %v1577 = vadd.f32 %v1348, %v1545
        %v1578 = vadd.f32 %v1349, %v1546
        %v1579 = vadd.f32 %v1350, %v1547
        %v1580 = vadd.f32 %v1351, %v1548
        %v1581 = vadd.f32 %v1352, %v1549
        %v1582 = vadd.f32 %v1353, %v1550
        %v1583 = vadd.f32 %v1354, %v1551
        %v1584 = vadd.f32 %v1355, %v1552
        %v1585 = vadd.f32 %v1356, %v1553
        %v1586 = vadd.f32 %v1357, %v1554
        %v1587 = vadd.f32 %v1358, %v1555
        %v1588 = vadd.f32 %v1359, %v1556
        %v1589 = vadd.f32 %v1360, %v1557
        %v1590 = vadd.f32 %v1361, %v1558
        %v1591 = vadd.f32 %v1362, %v1559
        %v1592 = vadd.f32 %v1363, %v1560
        %v1593 = vadd.f32 %v1364, %v1561
        %v1594 = vadd.f32 %v1365, %v1562
        %v1595 = vadd.f32 %v1366, %v1563
        %v1596 = vadd.f32 %v1367, %v1564
        %v1597 = vadd.f32 %v1368, %v1565
        %v1598 = vadd.f32 %v1369, %v1566
        %v1599 = vadd.f32 %v1370, %v1567
        %v1600 = vadd.f32 %v1371, %v1568
        %v1601 = vadd.f32 %v1372, %v1569
        %v1602 = vld [vmem:[%s2 + $0x2] sm:$0x1]
        %v1603 = vlaneseq
        %v1604 = vshrl.u32 %v1603, 7
        %v1605 = vsub.s32 0, %v1604
        %v1606 = vrot.slane %v1602, %v1605
        %v1607 = vadd.f32 %v889, %v1606
        %v1608 = vadd.f32 %v895, %v1606
        %v1609 = vadd.f32 %v901, %v1606
        %v1610 = vadd.f32 %v907, %v1606
        %v1611 = vadd.f32 %v913, %v1606
        %v1612 = vadd.f32 %v919, %v1606
        %v1613 = vadd.f32 %v925, %v1606
        %v1614 = vadd.f32 %v931, %v1606
        %v1615 = vadd.f32 %v937, %v1606
        %v1616 = vadd.f32 %v943, %v1606
        %v1617 = vadd.f32 %v949, %v1606
        %v1618 = vadd.f32 %v955, %v1606
        %v1619 = vadd.f32 %v961, %v1606
        %v1620 = vadd.f32 %v967, %v1606
        %v1621 = vadd.f32 %v973, %v1606
        %v1622 = vadd.f32 %v979, %v1606
        %v1623 = vadd.f32 %v985, %v1606
        %v1624 = vadd.f32 %v991, %v1606
        %v1625 = vadd.f32 %v997, %v1606
        %v1626 = vadd.f32 %v1003, %v1606
        %v1627 = vadd.f32 %v1009, %v1606
        %v1628 = vadd.f32 %v1015, %v1606
        %v1629 = vadd.f32 %v1021, %v1606
        %v1630 = vadd.f32 %v1027, %v1606
        %v1631 = vadd.f32 %v1033, %v1606
        %v1632 = vadd.f32 %v1039, %v1606
        %v1633 = vadd.f32 %v1045, %v1606
        %v1634 = vadd.f32 %v1051, %v1606
        %v1635 = vadd.f32 %v1057, %v1606
        %v1636 = vadd.f32 %v1063, %v1606
        %v1637 = vadd.f32 %v1069, %v1606
        %v1638 = vadd.f32 %v1075, %v1606
        %1640 = vset.pattern.permute.xlu0 0
        %1641 = vperm.xlu0 %1640, %v204
        %v1642 = vpop.permute.xlu0 %1641
        %1645 = vset.pattern.permute.xlu0 0
        %1646 = vperm.xlu0 %1645, %v205
        %v1647 = vpop.permute.xlu0 %1646
        %1650 = vset.pattern.permute.xlu0 0
        %1651 = vperm.xlu0 %1650, %v206
        %v1652 = vpop.permute.xlu0 %1651
        %1655 = vset.pattern.permute.xlu0 0
        %1656 = vperm.xlu0 %1655, %v207
        %v1657 = vpop.permute.xlu0 %1656
        %1660 = vset.pattern.permute.xlu0 0
        %1661 = vperm.xlu0 %1660, %v208
        %v1662 = vpop.permute.xlu0 %1661
        %1665 = vset.pattern.permute.xlu0 0
        %1666 = vperm.xlu0 %1665, %v209
        %v1667 = vpop.permute.xlu0 %1666
        %1670 = vset.pattern.permute.xlu0 0
        %1671 = vperm.xlu0 %1670, %v210
        %v1672 = vpop.permute.xlu0 %1671
        %1675 = vset.pattern.permute.xlu0 0
        %1676 = vperm.xlu0 %1675, %v211
        %v1677 = vpop.permute.xlu0 %1676
        %1680 = vset.pattern.permute.xlu0 0
        %1681 = vperm.xlu0 %1680, %v212
        %v1682 = vpop.permute.xlu0 %1681
        %1685 = vset.pattern.permute.xlu0 0
        %1686 = vperm.xlu0 %1685, %v213
        %v1687 = vpop.permute.xlu0 %1686
        %1690 = vset.pattern.permute.xlu0 0
        %1691 = vperm.xlu0 %1690, %v214
        %v1692 = vpop.permute.xlu0 %1691
        %1695 = vset.pattern.permute.xlu0 0
        %1696 = vperm.xlu0 %1695, %v215
        %v1697 = vpop.permute.xlu0 %1696
        %1700 = vset.pattern.permute.xlu0 0
        %1701 = vperm.xlu0 %1700, %v216
        %v1702 = vpop.permute.xlu0 %1701
        %1705 = vset.pattern.permute.xlu0 0
        %1706 = vperm.xlu0 %1705, %v217
        %v1707 = vpop.permute.xlu0 %1706
        %1710 = vset.pattern.permute.xlu0 0
        %1711 = vperm.xlu0 %1710, %v218
        %v1712 = vpop.permute.xlu0 %1711
        %1715 = vset.pattern.permute.xlu0 0
        %1716 = vperm.xlu0 %1715, %v219
        %v1717 = vpop.permute.xlu0 %1716
        %1720 = vset.pattern.permute.xlu0 0
        %1721 = vperm.xlu0 %1720, %v220
        %v1722 = vpop.permute.xlu0 %1721
        %1725 = vset.pattern.permute.xlu0 0
        %1726 = vperm.xlu0 %1725, %v221
        %v1727 = vpop.permute.xlu0 %1726
        %1730 = vset.pattern.permute.xlu0 0
        %1731 = vperm.xlu0 %1730, %v222
        %v1732 = vpop.permute.xlu0 %1731
        %1735 = vset.pattern.permute.xlu0 0
        %1736 = vperm.xlu0 %1735, %v223
        %v1737 = vpop.permute.xlu0 %1736
        %1740 = vset.pattern.permute.xlu0 0
        %1741 = vperm.xlu0 %1740, %v224
        %v1742 = vpop.permute.xlu0 %1741
        %1745 = vset.pattern.permute.xlu0 0
        %1746 = vperm.xlu0 %1745, %v225
        %v1747 = vpop.permute.xlu0 %1746
        %1750 = vset.pattern.permute.xlu0 0
        %1751 = vperm.xlu0 %1750, %v226
        %v1752 = vpop.permute.xlu0 %1751
        %1755 = vset.pattern.permute.xlu0 0
        %1756 = vperm.xlu0 %1755, %v227
        %v1757 = vpop.permute.xlu0 %1756
        %1760 = vset.pattern.permute.xlu0 0
        %1761 = vperm.xlu0 %1760, %v228
        %v1762 = vpop.permute.xlu0 %1761
        %1765 = vset.pattern.permute.xlu0 0
        %1766 = vperm.xlu0 %1765, %v229
        %v1767 = vpop.permute.xlu0 %1766
        %1770 = vset.pattern.permute.xlu0 0
        %1771 = vperm.xlu0 %1770, %v230
        %v1772 = vpop.permute.xlu0 %1771
        %1775 = vset.pattern.permute.xlu0 0
        %1776 = vperm.xlu0 %1775, %v231
        %v1777 = vpop.permute.xlu0 %1776
        %1780 = vset.pattern.permute.xlu0 0
        %1781 = vperm.xlu0 %1780, %v232
        %v1782 = vpop.permute.xlu0 %1781
        %1785 = vset.pattern.permute.xlu0 0
        %1786 = vperm.xlu0 %1785, %v233
        %v1787 = vpop.permute.xlu0 %1786
        %1790 = vset.pattern.permute.xlu0 0
        %1791 = vperm.xlu0 %1790, %v234
        %v1792 = vpop.permute.xlu0 %1791
        %1795 = vset.pattern.permute.xlu0 0
        %1796 = vperm.xlu0 %1795, %v235
        %v1797 = vpop.permute.xlu0 %1796
        %v1799 = vmul.f32 %v1642, %v1607
        %v1800 = vmul.f32 %v1647, %v1608
        %v1801 = vmul.f32 %v1652, %v1609
        %v1802 = vmul.f32 %v1657, %v1610
        %v1803 = vmul.f32 %v1662, %v1611
        %v1804 = vmul.f32 %v1667, %v1612
        %v1805 = vmul.f32 %v1672, %v1613
        %v1806 = vmul.f32 %v1677, %v1614
        %v1807 = vmul.f32 %v1682, %v1615
        %v1808 = vmul.f32 %v1687, %v1616
        %v1809 = vmul.f32 %v1692, %v1617
        %v1810 = vmul.f32 %v1697, %v1618
        %v1811 = vmul.f32 %v1702, %v1619
        %v1812 = vmul.f32 %v1707, %v1620
        %v1813 = vmul.f32 %v1712, %v1621
        %v1814 = vmul.f32 %v1717, %v1622
        %v1815 = vmul.f32 %v1722, %v1623
        %v1816 = vmul.f32 %v1727, %v1624
        %v1817 = vmul.f32 %v1732, %v1625
        %v1818 = vmul.f32 %v1737, %v1626
        %v1819 = vmul.f32 %v1742, %v1627
        %v1820 = vmul.f32 %v1747, %v1628
        %v1821 = vmul.f32 %v1752, %v1629
        %v1822 = vmul.f32 %v1757, %v1630
        %v1823 = vmul.f32 %v1762, %v1631
        %v1824 = vmul.f32 %v1767, %v1632
        %v1825 = vmul.f32 %v1772, %v1633
        %v1826 = vmul.f32 %v1777, %v1634
        %v1827 = vmul.f32 %v1782, %v1635
        %v1828 = vmul.f32 %v1787, %v1636
        %v1829 = vmul.f32 %v1792, %v1637
        %v1830 = vmul.f32 %v1797, %v1638
        %v1831 = vadd.f32 %v1570, %v1799
        %v1832 = vadd.f32 %v1571, %v1800
        %v1833 = vadd.f32 %v1572, %v1801
        %v1834 = vadd.f32 %v1573, %v1802
        %v1835 = vadd.f32 %v1574, %v1803
        %v1836 = vadd.f32 %v1575, %v1804
        %v1837 = vadd.f32 %v1576, %v1805
        %v1838 = vadd.f32 %v1577, %v1806
        %v1839 = vadd.f32 %v1578, %v1807
        %v1840 = vadd.f32 %v1579, %v1808
        %v1841 = vadd.f32 %v1580, %v1809
        %v1842 = vadd.f32 %v1581, %v1810
        %v1843 = vadd.f32 %v1582, %v1811
        %v1844 = vadd.f32 %v1583, %v1812
        %v1845 = vadd.f32 %v1584, %v1813
        %v1846 = vadd.f32 %v1585, %v1814
        %v1847 = vadd.f32 %v1586, %v1815
        %v1848 = vadd.f32 %v1587, %v1816
        %v1849 = vadd.f32 %v1588, %v1817
        %v1850 = vadd.f32 %v1589, %v1818
        %v1851 = vadd.f32 %v1590, %v1819
        %v1852 = vadd.f32 %v1591, %v1820
        %v1853 = vadd.f32 %v1592, %v1821
        %v1854 = vadd.f32 %v1593, %v1822
        %v1855 = vadd.f32 %v1594, %v1823
        %v1856 = vadd.f32 %v1595, %v1824
        %v1857 = vadd.f32 %v1596, %v1825
        %v1858 = vadd.f32 %v1597, %v1826
        %v1859 = vadd.f32 %v1598, %v1827
        %v1860 = vadd.f32 %v1599, %v1828
        %v1861 = vadd.f32 %v1600, %v1829
        %v1862 = vadd.f32 %v1601, %v1830
        %v1863 = vld [vmem:[%s2 + $0x3] sm:$0x1]
        %v1864 = vlaneseq
        %v1865 = vshrl.u32 %v1864, 7
        %v1866 = vsub.s32 0, %v1865
        %v1867 = vrot.slane %v1863, %v1866
        %v1868 = vadd.f32 %v891, %v1867
        %v1869 = vadd.f32 %v897, %v1867
        %v1870 = vadd.f32 %v903, %v1867
        %v1871 = vadd.f32 %v909, %v1867
        %v1872 = vadd.f32 %v915, %v1867
        %v1873 = vadd.f32 %v921, %v1867
        %v1874 = vadd.f32 %v927, %v1867
        %v1875 = vadd.f32 %v933, %v1867
        %v1876 = vadd.f32 %v939, %v1867
        %v1877 = vadd.f32 %v945, %v1867
        %v1878 = vadd.f32 %v951, %v1867
        %v1879 = vadd.f32 %v957, %v1867
        %v1880 = vadd.f32 %v963, %v1867
        %v1881 = vadd.f32 %v969, %v1867
        %v1882 = vadd.f32 %v975, %v1867
        %v1883 = vadd.f32 %v981, %v1867
        %v1884 = vadd.f32 %v987, %v1867
        %v1885 = vadd.f32 %v993, %v1867
        %v1886 = vadd.f32 %v999, %v1867
        %v1887 = vadd.f32 %v1005, %v1867
        %v1888 = vadd.f32 %v1011, %v1867
        %v1889 = vadd.f32 %v1017, %v1867
        %v1890 = vadd.f32 %v1023, %v1867
        %v1891 = vadd.f32 %v1029, %v1867
        %v1892 = vadd.f32 %v1035, %v1867
        %v1893 = vadd.f32 %v1041, %v1867
        %v1894 = vadd.f32 %v1047, %v1867
        %v1895 = vadd.f32 %v1053, %v1867
        %v1896 = vadd.f32 %v1059, %v1867
        %v1897 = vadd.f32 %v1065, %v1867
        %v1898 = vadd.f32 %v1071, %v1867
        %v1899 = vadd.f32 %v1077, %v1867
        %1901 = vset.pattern.permute.xlu0 0
        %1902 = vperm.xlu0 %1901, %v300
        %v1903 = vpop.permute.xlu0 %1902
        %1906 = vset.pattern.permute.xlu0 0
        %1907 = vperm.xlu0 %1906, %v301
        %v1908 = vpop.permute.xlu0 %1907
        %1911 = vset.pattern.permute.xlu0 0
        %1912 = vperm.xlu0 %1911, %v302
        %v1913 = vpop.permute.xlu0 %1912
        %1916 = vset.pattern.permute.xlu0 0
        %1917 = vperm.xlu0 %1916, %v303
        %v1918 = vpop.permute.xlu0 %1917
        %1921 = vset.pattern.permute.xlu0 0
        %1922 = vperm.xlu0 %1921, %v304
        %v1923 = vpop.permute.xlu0 %1922
        %1926 = vset.pattern.permute.xlu0 0
        %1927 = vperm.xlu0 %1926, %v305
        %v1928 = vpop.permute.xlu0 %1927
        %1931 = vset.pattern.permute.xlu0 0
        %1932 = vperm.xlu0 %1931, %v306
        %v1933 = vpop.permute.xlu0 %1932
        %1936 = vset.pattern.permute.xlu0 0
        %1937 = vperm.xlu0 %1936, %v307
        %v1938 = vpop.permute.xlu0 %1937
        %1941 = vset.pattern.permute.xlu0 0
        %1942 = vperm.xlu0 %1941, %v308
        %v1943 = vpop.permute.xlu0 %1942
        %1946 = vset.pattern.permute.xlu0 0
        %1947 = vperm.xlu0 %1946, %v309
        %v1948 = vpop.permute.xlu0 %1947
        %1951 = vset.pattern.permute.xlu0 0
        %1952 = vperm.xlu0 %1951, %v310
        %v1953 = vpop.permute.xlu0 %1952
        %1956 = vset.pattern.permute.xlu0 0
        %1957 = vperm.xlu0 %1956, %v311
        %v1958 = vpop.permute.xlu0 %1957
        %1961 = vset.pattern.permute.xlu0 0
        %1962 = vperm.xlu0 %1961, %v312
        %v1963 = vpop.permute.xlu0 %1962
        %1966 = vset.pattern.permute.xlu0 0
        %1967 = vperm.xlu0 %1966, %v313
        %v1968 = vpop.permute.xlu0 %1967
        %1971 = vset.pattern.permute.xlu0 0
        %1972 = vperm.xlu0 %1971, %v314
        %v1973 = vpop.permute.xlu0 %1972
        %1976 = vset.pattern.permute.xlu0 0
        %1977 = vperm.xlu0 %1976, %v315
        %v1978 = vpop.permute.xlu0 %1977
        %1981 = vset.pattern.permute.xlu0 0
        %1982 = vperm.xlu0 %1981, %v316
        %v1983 = vpop.permute.xlu0 %1982
        %1986 = vset.pattern.permute.xlu0 0
        %1987 = vperm.xlu0 %1986, %v317
        %v1988 = vpop.permute.xlu0 %1987
        %1991 = vset.pattern.permute.xlu0 0
        %1992 = vperm.xlu0 %1991, %v318
        %v1993 = vpop.permute.xlu0 %1992
        %1996 = vset.pattern.permute.xlu0 0
        %1997 = vperm.xlu0 %1996, %v319
        %v1998 = vpop.permute.xlu0 %1997
        %2001 = vset.pattern.permute.xlu0 0
        %2002 = vperm.xlu0 %2001, %v320
        %v2003 = vpop.permute.xlu0 %2002
        %2006 = vset.pattern.permute.xlu0 0
        %2007 = vperm.xlu0 %2006, %v321
        %v2008 = vpop.permute.xlu0 %2007
        %2011 = vset.pattern.permute.xlu0 0
        %2012 = vperm.xlu0 %2011, %v322
        %v2013 = vpop.permute.xlu0 %2012
        %2016 = vset.pattern.permute.xlu0 0
        %2017 = vperm.xlu0 %2016, %v323
        %v2018 = vpop.permute.xlu0 %2017
        %2021 = vset.pattern.permute.xlu0 0
        %2022 = vperm.xlu0 %2021, %v324
        %v2023 = vpop.permute.xlu0 %2022
        %2026 = vset.pattern.permute.xlu0 0
        %2027 = vperm.xlu0 %2026, %v325
        %v2028 = vpop.permute.xlu0 %2027
        %2031 = vset.pattern.permute.xlu0 0
        %2032 = vperm.xlu0 %2031, %v326
        %v2033 = vpop.permute.xlu0 %2032
        %2036 = vset.pattern.permute.xlu0 0
        %2037 = vperm.xlu0 %2036, %v327
        %v2038 = vpop.permute.xlu0 %2037
        %2041 = vset.pattern.permute.xlu0 0
        %2042 = vperm.xlu0 %2041, %v328
        %v2043 = vpop.permute.xlu0 %2042
        %2046 = vset.pattern.permute.xlu0 0
        %2047 = vperm.xlu0 %2046, %v329
        %v2048 = vpop.permute.xlu0 %2047
        %2051 = vset.pattern.permute.xlu0 0
        %2052 = vperm.xlu0 %2051, %v330
        %v2053 = vpop.permute.xlu0 %2052
        %2056 = vset.pattern.permute.xlu0 0
        %2057 = vperm.xlu0 %2056, %v331
        %v2058 = vpop.permute.xlu0 %2057
        %v2060 = vmul.f32 %v1903, %v1868
        %v2061 = vmul.f32 %v1908, %v1869
        %v2062 = vmul.f32 %v1913, %v1870
        %v2063 = vmul.f32 %v1918, %v1871
        %v2064 = vmul.f32 %v1923, %v1872
        %v2065 = vmul.f32 %v1928, %v1873
        %v2066 = vmul.f32 %v1933, %v1874
        %v2067 = vmul.f32 %v1938, %v1875
        %v2068 = vmul.f32 %v1943, %v1876
        %v2069 = vmul.f32 %v1948, %v1877
        %v2070 = vmul.f32 %v1953, %v1878
        %v2071 = vmul.f32 %v1958, %v1879
        %v2072 = vmul.f32 %v1963, %v1880
        %v2073 = vmul.f32 %v1968, %v1881
        %v2074 = vmul.f32 %v1973, %v1882
        %v2075 = vmul.f32 %v1978, %v1883
        %v2076 = vmul.f32 %v1983, %v1884
        %v2077 = vmul.f32 %v1988, %v1885
        %v2078 = vmul.f32 %v1993, %v1886
        %v2079 = vmul.f32 %v1998, %v1887
        %v2080 = vmul.f32 %v2003, %v1888
        %v2081 = vmul.f32 %v2008, %v1889
        %v2082 = vmul.f32 %v2013, %v1890
        %v2083 = vmul.f32 %v2018, %v1891
        %v2084 = vmul.f32 %v2023, %v1892
        %v2085 = vmul.f32 %v2028, %v1893
        %v2086 = vmul.f32 %v2033, %v1894
        %v2087 = vmul.f32 %v2038, %v1895
        %v2088 = vmul.f32 %v2043, %v1896
        %v2089 = vmul.f32 %v2048, %v1897
        %v2090 = vmul.f32 %v2053, %v1898
        %v2091 = vmul.f32 %v2058, %v1899
        %v2092 = vadd.f32 %v1831, %v2060
        %v2093 = vadd.f32 %v1832, %v2061
        %v2094 = vadd.f32 %v1833, %v2062
        %v2095 = vadd.f32 %v1834, %v2063
        %v2096 = vadd.f32 %v1835, %v2064
        %v2097 = vadd.f32 %v1836, %v2065
        %v2098 = vadd.f32 %v1837, %v2066
        %v2099 = vadd.f32 %v1838, %v2067
        %v2100 = vadd.f32 %v1839, %v2068
        %v2101 = vadd.f32 %v1840, %v2069
        %v2102 = vadd.f32 %v1841, %v2070
        %v2103 = vadd.f32 %v1842, %v2071
        %v2104 = vadd.f32 %v1843, %v2072
        %v2105 = vadd.f32 %v1844, %v2073
        %v2106 = vadd.f32 %v1845, %v2074
        %v2107 = vadd.f32 %v1846, %v2075
        %v2108 = vadd.f32 %v1847, %v2076
        %v2109 = vadd.f32 %v1848, %v2077
        %v2110 = vadd.f32 %v1849, %v2078
        %v2111 = vadd.f32 %v1850, %v2079
        %v2112 = vadd.f32 %v1851, %v2080
        %v2113 = vadd.f32 %v1852, %v2081
        %v2114 = vadd.f32 %v1853, %v2082
        %v2115 = vadd.f32 %v1854, %v2083
        %v2116 = vadd.f32 %v1855, %v2084
        %v2117 = vadd.f32 %v1856, %v2085
        %v2118 = vadd.f32 %v1857, %v2086
        %v2119 = vadd.f32 %v1858, %v2087
        %v2120 = vadd.f32 %v1859, %v2088
        %v2121 = vadd.f32 %v1860, %v2089
        %v2122 = vadd.f32 %v1861, %v2090
        %v2123 = vadd.f32 %v1862, %v2091
        %v2124 = vld [vmem:[%s2 + $0x4] sm:$0x1]
        %v2125 = vlaneseq
        %v2126 = vshrl.u32 %v2125, 7
        %v2127 = vsub.s32 0, %v2126
        %v2128 = vrot.slane %v2124, %v2127
        %v2129 = vadd.f32 %v1146, %v2128
        %v2130 = vadd.f32 %v1151, %v2128
        %v2131 = vadd.f32 %v1156, %v2128
        %v2132 = vadd.f32 %v1161, %v2128
        %v2133 = vadd.f32 %v1166, %v2128
        %v2134 = vadd.f32 %v1171, %v2128
        %v2135 = vadd.f32 %v1176, %v2128
        %v2136 = vadd.f32 %v1181, %v2128
        %v2137 = vadd.f32 %v1186, %v2128
        %v2138 = vadd.f32 %v1191, %v2128
        %v2139 = vadd.f32 %v1196, %v2128
        %v2140 = vadd.f32 %v1201, %v2128
        %v2141 = vadd.f32 %v1206, %v2128
        %v2142 = vadd.f32 %v1211, %v2128
        %v2143 = vadd.f32 %v1216, %v2128
        %v2144 = vadd.f32 %v1221, %v2128
        %v2145 = vadd.f32 %v1226, %v2128
        %v2146 = vadd.f32 %v1231, %v2128
        %v2147 = vadd.f32 %v1236, %v2128
        %v2148 = vadd.f32 %v1241, %v2128
        %v2149 = vadd.f32 %v1246, %v2128
        %v2150 = vadd.f32 %v1251, %v2128
        %v2151 = vadd.f32 %v1256, %v2128
        %v2152 = vadd.f32 %v1261, %v2128
        %v2153 = vadd.f32 %v1266, %v2128
        %v2154 = vadd.f32 %v1271, %v2128
        %v2155 = vadd.f32 %v1276, %v2128
        %v2156 = vadd.f32 %v1281, %v2128
        %v2157 = vadd.f32 %v1286, %v2128
        %v2158 = vadd.f32 %v1291, %v2128
        %v2159 = vadd.f32 %v1296, %v2128
        %v2160 = vadd.f32 %v1301, %v2128
        %2162 = vset.pattern.permute.xlu0 0
        %2163 = vperm.xlu0 %2162, %v396
        %v2164 = vpop.permute.xlu0 %2163
        %2167 = vset.pattern.permute.xlu0 0
        %2168 = vperm.xlu0 %2167, %v397
        %v2169 = vpop.permute.xlu0 %2168
        %2172 = vset.pattern.permute.xlu0 0
        %2173 = vperm.xlu0 %2172, %v398
        %v2174 = vpop.permute.xlu0 %2173
        %2177 = vset.pattern.permute.xlu0 0
        %2178 = vperm.xlu0 %2177, %v399
        %v2179 = vpop.permute.xlu0 %2178
        %2182 = vset.pattern.permute.xlu0 0
        %2183 = vperm.xlu0 %2182, %v400
        %v2184 = vpop.permute.xlu0 %2183
        %2187 = vset.pattern.permute.xlu0 0
        %2188 = vperm.xlu0 %2187, %v401
        %v2189 = vpop.permute.xlu0 %2188
        %2192 = vset.pattern.permute.xlu0 0
        %2193 = vperm.xlu0 %2192, %v402
        %v2194 = vpop.permute.xlu0 %2193
        %2197 = vset.pattern.permute.xlu0 0
        %2198 = vperm.xlu0 %2197, %v403
        %v2199 = vpop.permute.xlu0 %2198
        %2202 = vset.pattern.permute.xlu0 0
        %2203 = vperm.xlu0 %2202, %v404
        %v2204 = vpop.permute.xlu0 %2203
        %2207 = vset.pattern.permute.xlu0 0
        %2208 = vperm.xlu0 %2207, %v405
        %v2209 = vpop.permute.xlu0 %2208
        %2212 = vset.pattern.permute.xlu0 0
        %2213 = vperm.xlu0 %2212, %v406
        %v2214 = vpop.permute.xlu0 %2213
        %2217 = vset.pattern.permute.xlu0 0
        %2218 = vperm.xlu0 %2217, %v407
        %v2219 = vpop.permute.xlu0 %2218
        %2222 = vset.pattern.permute.xlu0 0
        %2223 = vperm.xlu0 %2222, %v408
        %v2224 = vpop.permute.xlu0 %2223
        %2227 = vset.pattern.permute.xlu0 0
        %2228 = vperm.xlu0 %2227, %v409
        %v2229 = vpop.permute.xlu0 %2228
        %2232 = vset.pattern.permute.xlu0 0
        %2233 = vperm.xlu0 %2232, %v410
        %v2234 = vpop.permute.xlu0 %2233
        %2237 = vset.pattern.permute.xlu0 0
        %2238 = vperm.xlu0 %2237, %v411
        %v2239 = vpop.permute.xlu0 %2238
        %2242 = vset.pattern.permute.xlu0 0
        %2243 = vperm.xlu0 %2242, %v412
        %v2244 = vpop.permute.xlu0 %2243
        %2247 = vset.pattern.permute.xlu0 0
        %2248 = vperm.xlu0 %2247, %v413
        %v2249 = vpop.permute.xlu0 %2248
        %2252 = vset.pattern.permute.xlu0 0
        %2253 = vperm.xlu0 %2252, %v414
        %v2254 = vpop.permute.xlu0 %2253
        %2257 = vset.pattern.permute.xlu0 0
        %2258 = vperm.xlu0 %2257, %v415
        %v2259 = vpop.permute.xlu0 %2258
        %2262 = vset.pattern.permute.xlu0 0
        %2263 = vperm.xlu0 %2262, %v416
        %v2264 = vpop.permute.xlu0 %2263
        %2267 = vset.pattern.permute.xlu0 0
        %2268 = vperm.xlu0 %2267, %v417
        %v2269 = vpop.permute.xlu0 %2268
        %2272 = vset.pattern.permute.xlu0 0
        %2273 = vperm.xlu0 %2272, %v418
        %v2274 = vpop.permute.xlu0 %2273
        %2277 = vset.pattern.permute.xlu0 0
        %2278 = vperm.xlu0 %2277, %v419
        %v2279 = vpop.permute.xlu0 %2278
        %2282 = vset.pattern.permute.xlu0 0
        %2283 = vperm.xlu0 %2282, %v420
        %v2284 = vpop.permute.xlu0 %2283
        %2287 = vset.pattern.permute.xlu0 0
        %2288 = vperm.xlu0 %2287, %v421
        %v2289 = vpop.permute.xlu0 %2288
        %2292 = vset.pattern.permute.xlu0 0
        %2293 = vperm.xlu0 %2292, %v422
        %v2294 = vpop.permute.xlu0 %2293
        %2297 = vset.pattern.permute.xlu0 0
        %2298 = vperm.xlu0 %2297, %v423
        %v2299 = vpop.permute.xlu0 %2298
        %2302 = vset.pattern.permute.xlu0 0
        %2303 = vperm.xlu0 %2302, %v424
        %v2304 = vpop.permute.xlu0 %2303
        %2307 = vset.pattern.permute.xlu0 0
        %2308 = vperm.xlu0 %2307, %v425
        %v2309 = vpop.permute.xlu0 %2308
        %2312 = vset.pattern.permute.xlu0 0
        %2313 = vperm.xlu0 %2312, %v426
        %v2314 = vpop.permute.xlu0 %2313
        %2317 = vset.pattern.permute.xlu0 0
        %2318 = vperm.xlu0 %2317, %v427
        %v2319 = vpop.permute.xlu0 %2318
        %v2321 = vmul.f32 %v2164, %v2129
        %v2322 = vmul.f32 %v2169, %v2130
        %v2323 = vmul.f32 %v2174, %v2131
        %v2324 = vmul.f32 %v2179, %v2132
        %v2325 = vmul.f32 %v2184, %v2133
        %v2326 = vmul.f32 %v2189, %v2134
        %v2327 = vmul.f32 %v2194, %v2135
        %v2328 = vmul.f32 %v2199, %v2136
        %v2329 = vmul.f32 %v2204, %v2137
        %v2330 = vmul.f32 %v2209, %v2138
        %v2331 = vmul.f32 %v2214, %v2139
        %v2332 = vmul.f32 %v2219, %v2140
        %v2333 = vmul.f32 %v2224, %v2141
        %v2334 = vmul.f32 %v2229, %v2142
        %v2335 = vmul.f32 %v2234, %v2143
        %v2336 = vmul.f32 %v2239, %v2144
        %v2337 = vmul.f32 %v2244, %v2145
        %v2338 = vmul.f32 %v2249, %v2146
        %v2339 = vmul.f32 %v2254, %v2147
        %v2340 = vmul.f32 %v2259, %v2148
        %v2341 = vmul.f32 %v2264, %v2149
        %v2342 = vmul.f32 %v2269, %v2150
        %v2343 = vmul.f32 %v2274, %v2151
        %v2344 = vmul.f32 %v2279, %v2152
        %v2345 = vmul.f32 %v2284, %v2153
        %v2346 = vmul.f32 %v2289, %v2154
        %v2347 = vmul.f32 %v2294, %v2155
        %v2348 = vmul.f32 %v2299, %v2156
        %v2349 = vmul.f32 %v2304, %v2157
        %v2350 = vmul.f32 %v2309, %v2158
        %v2351 = vmul.f32 %v2314, %v2159
        %v2352 = vmul.f32 %v2319, %v2160
        %v2353 = vadd.f32 %v2092, %v2321
        %v2354 = vadd.f32 %v2093, %v2322
        %v2355 = vadd.f32 %v2094, %v2323
        %v2356 = vadd.f32 %v2095, %v2324
        %v2357 = vadd.f32 %v2096, %v2325
        %v2358 = vadd.f32 %v2097, %v2326
        %v2359 = vadd.f32 %v2098, %v2327
        %v2360 = vadd.f32 %v2099, %v2328
        %v2361 = vadd.f32 %v2100, %v2329
        %v2362 = vadd.f32 %v2101, %v2330
        %v2363 = vadd.f32 %v2102, %v2331
        %v2364 = vadd.f32 %v2103, %v2332
        %v2365 = vadd.f32 %v2104, %v2333
        %v2366 = vadd.f32 %v2105, %v2334
        %v2367 = vadd.f32 %v2106, %v2335
        %v2368 = vadd.f32 %v2107, %v2336
        %v2369 = vadd.f32 %v2108, %v2337
        %v2370 = vadd.f32 %v2109, %v2338
        %v2371 = vadd.f32 %v2110, %v2339
        %v2372 = vadd.f32 %v2111, %v2340
        %v2373 = vadd.f32 %v2112, %v2341
        %v2374 = vadd.f32 %v2113, %v2342
        %v2375 = vadd.f32 %v2114, %v2343
        %v2376 = vadd.f32 %v2115, %v2344
        %v2377 = vadd.f32 %v2116, %v2345
        %v2378 = vadd.f32 %v2117, %v2346
        %v2379 = vadd.f32 %v2118, %v2347
        %v2380 = vadd.f32 %v2119, %v2348
        %v2381 = vadd.f32 %v2120, %v2349
        %v2382 = vadd.f32 %v2121, %v2350
        %v2383 = vadd.f32 %v2122, %v2351
        %v2384 = vadd.f32 %v2123, %v2352
        %v2385 = vmax.f32 %v2353, 0.0
        %v2386 = vmax.f32 %v2354, 0.0
        %v2387 = vmax.f32 %v2355, 0.0
        %v2388 = vmax.f32 %v2356, 0.0
        %v2389 = vmax.f32 %v2357, 0.0
        %v2390 = vmax.f32 %v2358, 0.0
        %v2391 = vmax.f32 %v2359, 0.0
        %v2392 = vmax.f32 %v2360, 0.0
        %v2393 = vmax.f32 %v2361, 0.0
        %v2394 = vmax.f32 %v2362, 0.0
        %v2395 = vmax.f32 %v2363, 0.0
        %v2396 = vmax.f32 %v2364, 0.0
        %v2397 = vmax.f32 %v2365, 0.0
        %v2398 = vmax.f32 %v2366, 0.0
        %v2399 = vmax.f32 %v2367, 0.0
        %v2400 = vmax.f32 %v2368, 0.0
        %v2401 = vmax.f32 %v2369, 0.0
        %v2402 = vmax.f32 %v2370, 0.0
        %v2403 = vmax.f32 %v2371, 0.0
        %v2404 = vmax.f32 %v2372, 0.0
        %v2405 = vmax.f32 %v2373, 0.0
        %v2406 = vmax.f32 %v2374, 0.0
        %v2407 = vmax.f32 %v2375, 0.0
        %v2408 = vmax.f32 %v2376, 0.0
        %v2409 = vmax.f32 %v2377, 0.0
        %v2410 = vmax.f32 %v2378, 0.0
        %v2411 = vmax.f32 %v2379, 0.0
        %v2412 = vmax.f32 %v2380, 0.0
        %v2413 = vmax.f32 %v2381, 0.0
        %v2414 = vmax.f32 %v2382, 0.0
        %v2415 = vmax.f32 %v2383, 0.0
        %v2416 = vmax.f32 %v2384, 0.0
        %v2417 = vlaneseq
        %v2418 = vand.u32 %v2417, 127
        %vm2419 = vcmp.eq.s32.totalorder %v2418, 0
        %v2420 = vsel %vm2419, %v1412, %v2385
        %v2421 = vsel %vm2419, %v1416, %v2386
        %v2422 = vsel %vm2419, %v1420, %v2387
        %v2423 = vsel %vm2419, %v1424, %v2388
        %v2424 = vsel %vm2419, %v1428, %v2389
        %v2425 = vsel %vm2419, %v1432, %v2390
        %v2426 = vsel %vm2419, %v1436, %v2391
        %v2427 = vsel %vm2419, %v1440, %v2392
        %v2428 = vsel %vm2419, %v1444, %v2393
        %v2429 = vsel %vm2419, %v1448, %v2394
        %v2430 = vsel %vm2419, %v1452, %v2395
        %v2431 = vsel %vm2419, %v1456, %v2396
        %v2432 = vsel %vm2419, %v1460, %v2397
        %v2433 = vsel %vm2419, %v1464, %v2398
        %v2434 = vsel %vm2419, %v1468, %v2399
        %v2435 = vsel %vm2419, %v1472, %v2400
        %v2436 = vsel %vm2419, %v1476, %v2401
        %v2437 = vsel %vm2419, %v1480, %v2402
        %v2438 = vsel %vm2419, %v1484, %v2403
        %v2439 = vsel %vm2419, %v1488, %v2404
        %v2440 = vsel %vm2419, %v1492, %v2405
        %v2441 = vsel %vm2419, %v1496, %v2406
        %v2442 = vsel %vm2419, %v1500, %v2407
        %v2443 = vsel %vm2419, %v1504, %v2408
        %v2444 = vsel %vm2419, %v1508, %v2409
        %v2445 = vsel %vm2419, %v1512, %v2410
        %v2446 = vsel %vm2419, %v1516, %v2411
        %v2447 = vsel %vm2419, %v1520, %v2412
        %v2448 = vsel %vm2419, %v1524, %v2413
        %v2449 = vsel %vm2419, %v1528, %v2414
        %v2450 = vsel %vm2419, %v1532, %v2415
        %v2451 = vsel %vm2419, %v1536, %v2416
        %2452 = vst [vmem:[%s164] sm:$0xff] %v2420
        %2453 = vst [vmem:[%s164 + $0x8] sm:$0xff] %v2421
        %2454 = vst [vmem:[%s164 + $0x10] sm:$0xff] %v2422
        %2455 = vst [vmem:[%s164 + $0x18] sm:$0xff] %v2423
        %2456 = vst [vmem:[%s164 + $0x20] sm:$0xff] %v2424
        %2457 = vst [vmem:[%s164 + $0x28] sm:$0xff] %v2425
        %2458 = vst [vmem:[%s164 + $0x30] sm:$0xff] %v2426
        %2459 = vst [vmem:[%s164 + $0x38] sm:$0xff] %v2427
        %2460 = vst [vmem:[%s164 + $0x40] sm:$0xff] %v2428
        %2461 = vst [vmem:[%s164 + $0x48] sm:$0xff] %v2429
        %2462 = vst [vmem:[%s164 + $0x50] sm:$0xff] %v2430
        %2463 = vst [vmem:[%s164 + $0x58] sm:$0xff] %v2431
        %2464 = vst [vmem:[%s164 + $0x60] sm:$0xff] %v2432
        %2465 = vst [vmem:[%s164 + $0x68] sm:$0xff] %v2433
        %2466 = vst [vmem:[%s164 + $0x70] sm:$0xff] %v2434
        %2467 = vst [vmem:[%s164 + $0x78] sm:$0xff] %v2435
        %2468 = vst [vmem:[%s164 + $0x80] sm:$0xff] %v2436
        %2469 = vst [vmem:[%s164 + $0x88] sm:$0xff] %v2437
        %2470 = vst [vmem:[%s164 + $0x90] sm:$0xff] %v2438
        %2471 = vst [vmem:[%s164 + $0x98] sm:$0xff] %v2439
        %2472 = vst [vmem:[%s164 + $0xa0] sm:$0xff] %v2440
        %2473 = vst [vmem:[%s164 + $0xa8] sm:$0xff] %v2441
        %2474 = vst [vmem:[%s164 + $0xb0] sm:$0xff] %v2442
        %2475 = vst [vmem:[%s164 + $0xb8] sm:$0xff] %v2443
        %2476 = vst [vmem:[%s164 + $0xc0] sm:$0xff] %v2444
        %2477 = vst [vmem:[%s164 + $0xc8] sm:$0xff] %v2445
        %2478 = vst [vmem:[%s164 + $0xd0] sm:$0xff] %v2446
        %2479 = vst [vmem:[%s164 + $0xd8] sm:$0xff] %v2447
        %2480 = vst [vmem:[%s164 + $0xe0] sm:$0xff] %v2448
        %2481 = vst [vmem:[%s164 + $0xe8] sm:$0xff] %v2449
        %2482 = vst [vmem:[%s164 + $0xf0] sm:$0xff] %v2450
        %2483 = vst [vmem:[%s164 + $0xf8] sm:$0xff] %v2451
        %s2484 = sand.u32 %s93, 1
        %s2485 = scalar_lea.sflag [#allocation3], %s2484
        %s2486 = sand.u32 %s93, 1
        %s2487 = smul.addr %s2486, 256
        %s2488 = scalar_lea.vmem [#allocation2], %s2487
        // Predicated region
        $region33: #{tpu_custom_call.1} parent=31 // pred_check
          %p2489 = pneg %p103
        $region34: #{tpu_custom_call.1} parent=31 // pred_check_branch
          %2491 = sbr.rel (%p2489) target = $region36
        $region35: #{tpu_custom_call.1} parent=31 // pred_region
          %s2492 = smul.u32 32, %s17
          %s2494 = ssub.s32 4096, 4096
          %2495 = vsyncadd %s2485, %s2494
          %s2496 = smul.addr %s2492, 128
          %s2497 = scalar_lea.hbm %s3, %s2496
          %s2498 = sshll.u32 %s2488, 4
          %s2499 = int_to_ptr.vmem [resolvable:$true] %s2498
          %2504 = dma.vmem_to_hbm [thread:$0]  %s2499, 4096, %s2497, %s2485, 128, 128, 8
        $region36: #{tpu_custom_call.1} parent=31 // pred_fallthru
          _
      $region32: #{tpu_custom_call.1} parent=5 // pred_fallthru
        _
      %p2505 = scmp.le.s32.totalorder 2, %s12
      // Predicated region
      $region37: #{tpu_custom_call.1} parent=5 // pred_check
        %p2506 = pneg %p2505
      $region38: #{tpu_custom_call.1} parent=5 // pred_check_branch
        %2508 = sbr.rel (%p2506) target = $region40
      $region39: #{tpu_custom_call.1} parent=5 // pred_region
        %s2509 = ssub.s32 %s12, 2
        // Predicated region
        $region41: #{tpu_custom_call.1} parent=39 // pred_check
          %p2510 = pneg %p109
        $region42: #{tpu_custom_call.1} parent=39 // pred_check_branch
          %2512 = sbr.rel (%p2510) target = $region44
        $region43: #{tpu_custom_call.1} parent=39 // pred_region
          %s2513 = sand.u32 %s94, 1
          %s2514 = scalar_lea.sflag [#allocation3], %s2513
          %s2515 = sand.u32 %s94, 1
          %s2516 = smul.addr %s2515, 256
          %s2517 = scalar_lea.vmem [#allocation2], %s2516
          %2518 = dma.done %s2514, 4096
        $region44: #{tpu_custom_call.1} parent=39 // pred_fallthru
          _
      $region40: #{tpu_custom_call.1} parent=5 // pred_fallthru
        _
    $region6: #{tpu_custom_call.1} parent=1 // loop_footer
      %s16 = sadd.s32 1, %s12
    $region7: #{tpu_custom_call.1} parent=1 // loop_footer_branch
      %11 = sbr.rel target = $region3
    $region8: #{tpu_custom_call.1} parent=1 // loop_exit
      _
    %2519 = vsyncpa [#allocation3], 1
    %s2520 = scalar_lea.sflag [#allocation3], 1
    %2521 = vsyncpa %s2520, 1

</llo_original>
